<compile_context>
chip_gen: v7x
topology: tpu7x:2x2x1
jax: 0.10.0
libtpu: 0.0.40
codegen_flags: <defaults>
</compile_context>

<pallas_src>
import functools

import jax
import jax.numpy as jnp
from jax.experimental import pallas as pl
from jax.experimental.pallas import tpu as pltpu


def autoencoder_kernel(
    x_ref,
    w1_ref, b1_ref,     # packed Linear(input -> 128)              + ReLU
    w2_ref, b2_ref,     # packed Linear(128 -> 64)                 + ReLU
    w34_ref, b34_ref,   # packed folded Linear(64 -> latent -> 64) + ReLU
    w5_ref, b5_ref,     # packed Linear(64 -> 128)                 + ReLU
    w6_ref, b6_ref,     # packed Linear(128 -> input)
    out_ref,
):
    cdt = w1_ref.dtype  # matmul operand dtype (bf16 by default, f32 optional)

    def layer(h, w_ref, b_ref, relu):
        y = jnp.dot(h, w_ref[...], preferred_element_type=jnp.float32) + b_ref[...]
        if relu:
            y = jnp.maximum(y, 0.0)
        return y

    h = x_ref[...].astype(cdt)
    h = layer(h, w1_ref, b1_ref, True).astype(cdt)
    h = layer(h, w2_ref, b2_ref, True).astype(cdt)
    h = layer(h, w34_ref, b34_ref, True).astype(cdt)
    h = layer(h, w5_ref, b5_ref, True).astype(cdt)
    y = layer(h, w6_ref, b6_ref, False)
    out_ref[...] = y.astype(out_ref.dtype)


def _round_up(x, m):
    return ((x + m - 1) // m) * m


def _block_diag(w, pack):
    """[in, out] -> block-diagonal [pack*in, pack*out] (pack copies of w)."""
    if pack == 1:
        return w
    i, o = w.shape
    eye = jnp.eye(pack, dtype=w.dtype)
    return jnp.einsum("pq,io->piqo", eye, w).reshape(pack * i, pack * o)


def _pick_packed_tile(bp, target_p):
    """Packed-row tile: multiple of 8 sublanes; >=2 grid steps when possible (v7x)."""
    if bp <= 8:
        return bp                               # single full block, grid = 1
    two_way = _round_up(pl.cdiv(bp, 2), 8)      # guarantees at least 2 grid steps
    return max(8, min(_round_up(max(target_p, 8), 8), two_way))


@functools.partial(jax.jit, static_argnames=("batch_rows_per_step", "compute_dtype"))
def autoencoder_forward(x, params, *, batch_rows_per_step=4096,
                        compute_dtype=jnp.bfloat16):
    """x: [B, input_dim]. params: 6 tuples (W_t, b) with W_t pre-transposed [in, out]."""
    B, input_dim = x.shape
    (w1, b1), (w2, b2), (w3, b3), (w4, b4), (w5, b5), (w6, b6) = params

    # Fold the latent-adjacent linears (no nonlinearity between them in the reference).
    w34 = jnp.dot(w3, w4, preferred_element_type=jnp.float32)
    b34 = jnp.dot(b3, w4, preferred_element_type=jnp.float32) + b4
    layers = [(w1, b1), (w2, b2), (w34, b34), (w5, b5), (w6, b6)]

    # Lane packing factor: pack batch rows into 128 lanes when input_dim divides 128.
    pack = 128 // input_dim if (input_dim <= 128 and 128 % input_dim == 0) else 1

    # Block-diagonal weight expansion keeps every matmul / activation 128-lane dense.
    packed = [(_block_diag(w, pack).astype(compute_dtype),
               jnp.tile(b, pack).reshape(1, -1).astype(jnp.float32))
              for (w, b) in layers]

    # Pack x: [B, in] -> [B/pack, pack*in]. Only (B % pack) < pack rows of padding are
    # ever added; grid-level raggedness is handled by cdiv + Pallas boundary blocks
    # (rows are independent, padded/garbage rows are sliced off below).
    bp_rows = _round_up(B, pack)
    if bp_rows != B:
        x = jnp.pad(x, ((0, bp_rows - B), (0, 0)))
    bp = bp_rows // pack
    lanes = pack * input_dim
    xp = x.reshape(bp, lanes)

    tile_p = _pick_packed_tile(bp, max(1, batch_rows_per_step // pack))
    grid = (pl.cdiv(bp, tile_p),)

    x_spec = pl.BlockSpec((tile_p, lanes), lambda i: (i, 0))
    out_spec = pl.BlockSpec((tile_p, lanes), lambda i: (i, 0))
    w_args, w_specs = [], []
    for (w, b) in packed:
        w_args += [w, b]
        # Full-array blocks with constant index maps -> weights stay resident in VMEM.
        w_specs += [pl.BlockSpec(w.shape, lambda i: (0, 0)),
                    pl.BlockSpec(b.shape, lambda i: (0, 0))]

    flops = 2 * bp * sum(w.shape[0] * w.shape[1] for w, _ in packed)
    bytes_accessed = (2 * bp * lanes * 4
                      + sum(w.size * w.dtype.itemsize + b.size * 4 for w, b in packed))

    out = pl.pallas_call(
        autoencoder_kernel,
        out_shape=jax.ShapeDtypeStruct((bp, lanes), x.dtype),
        grid_spec=pltpu.PrefetchScalarGridSpec(
            num_scalar_prefetch=0,
            grid=grid,
            in_specs=[x_spec] + w_specs,
            out_specs=out_spec,
        ),
        compiler_params=pltpu.CompilerParams(
            dimension_semantics=("parallel",),
            vmem_limit_bytes=64 * 1024 * 1024,
        ),
        cost_estimate=pl.CostEstimate(
            flops=flops, transcendentals=0, bytes_accessed=bytes_accessed),
    )(xp, *w_args)

    return out.reshape(bp_rows, input_dim)[:B]


def init_linear(key, in_features, out_features):
    """PyTorch nn.Linear default init: U(-1/sqrt(in), 1/sqrt(in)).
    Weight returned already transposed to [in, out]."""
    kw, kb = jax.random.split(key)
    bound = 1.0 / jnp.sqrt(jnp.float32(in_features))
    w_t = jax.random.uniform(
        kw, (in_features, out_features), jnp.float32, minval=-bound, maxval=bound)
    b = jax.random.uniform(
        kb, (out_features,), jnp.float32, minval=-bound, maxval=bound)
    return w_t, b


def init_autoencoder_params(key, input_dim, latent_dim):
    dims = [
        (input_dim, 128),
        (128, 64),
        (64, latent_dim),
        (latent_dim, 64),
        (64, 128),
        (128, input_dim),
    ]
    keys = jax.random.split(key, len(dims))
    return [init_linear(k, i, o) for k, (i, o) in zip(keys, dims)]


def reference_forward(x, params):
    """Plain-JAX reference matching the PyTorch forward exactly (no folding/packing)."""
    relu_after = [True, True, False, True, True, False]
    h = x
    for (w, b), do_relu in zip(params, relu_after):
        h = h @ w + b
        if do_relu:
            h = jnp.maximum(h, 0.0)
    return h


if __name__ == "__main__":
    input_dim = 32
    latent_dim = 8

    key = jax.random.PRNGKey(0)
    k_params, k_x1, k_x2 = jax.random.split(key, 3)

    params = init_autoencoder_params(k_params, input_dim, latent_dim)

    # Path 1: exact f32 matmul operands; batch=84 is not a multiple of the pack
    # factor (pads to 88 rows -> 22 packed rows) and yields 2 grid steps with a
    # ragged last block — exercises the no-grid-padding path.
    x1 = jax.random.normal(k_x1, (84, input_dim), jnp.float32)
    ref1 = reference_forward(x1, params)
    out1 = jax.block_until_ready(
        autoencoder_forward(x1, params, compute_dtype=jnp.float32))
    assert out1.shape == ref1.shape
    assert jnp.allclose(out1, ref1, atol=1e-4, rtol=1e-4), "mismatch (f32 path)"

    # Path 2: default bf16 matmul operands (f32 accumulation), small per-step row
    # budget -> 3 'parallel' grid steps that divide the packed batch exactly.
    x2 = jax.random.normal(k_x2, (96, input_dim), jnp.float32)
    ref2 = reference_forward(x2, params)
    out2 = jax.block_until_ready(
        autoencoder_forward(x2, params, batch_rows_per_step=32))
    assert out2.shape == ref2.shape
    assert jnp.allclose(out2, ref2, atol=5e-2, rtol=5e-2), "mismatch (bf16 path)"

    print("KERNEL_OK")
</pallas_src>

<mosaic_0001>
module attributes {stable_mosaic.version = 11 : i64} {
  func.func @autoencoder_kernel(%arg0: i32, %arg1: memref<16x128xf32, #tpu.memory_space<vmem>>, %arg2: memref<128x512xf32, #tpu.memory_space<vmem>>, %arg3: memref<1x512xf32, #tpu.memory_space<vmem>>, %arg4: memref<512x256xf32, #tpu.memory_space<vmem>>, %arg5: memref<1x256xf32, #tpu.memory_space<vmem>>, %arg6: memref<256x256xf32, #tpu.memory_space<vmem>>, %arg7: memref<1x256xf32, #tpu.memory_space<vmem>>, %arg8: memref<256x512xf32, #tpu.memory_space<vmem>>, %arg9: memref<1x512xf32, #tpu.memory_space<vmem>>, %arg10: memref<512x128xf32, #tpu.memory_space<vmem>>, %arg11: memref<1x128xf32, #tpu.memory_space<vmem>>, %arg12: memref<16x128xf32, #tpu.memory_space<vmem>>) attributes {dimension_semantics = [#tpu.dimension_semantics<parallel>], iteration_bounds = array<i64: 2>, scalar_prefetch = 0 : i64, scratch_operands = 0 : i64, tpu.core_type = #tpu.core_type<tc>, window_params = [{transform_indices = @transform_0, window_bounds = array<i64: 16, 128>}, {pipeline_mode = #tpu.pipeline_mode<synchronous>, transform_indices = @transform_1, window_bounds = array<i64: 128, 512>}, {pipeline_mode = #tpu.pipeline_mode<synchronous>, transform_indices = @transform_2, window_bounds = array<i64: 1, 512>}, {pipeline_mode = #tpu.pipeline_mode<synchronous>, transform_indices = @transform_3, window_bounds = array<i64: 512, 256>}, {pipeline_mode = #tpu.pipeline_mode<synchronous>, transform_indices = @transform_4, window_bounds = array<i64: 1, 256>}, {pipeline_mode = #tpu.pipeline_mode<synchronous>, transform_indices = @transform_5, window_bounds = array<i64: 256, 256>}, {pipeline_mode = #tpu.pipeline_mode<synchronous>, transform_indices = @transform_6, window_bounds = array<i64: 1, 256>}, {pipeline_mode = #tpu.pipeline_mode<synchronous>, transform_indices = @transform_7, window_bounds = array<i64: 256, 512>}, {pipeline_mode = #tpu.pipeline_mode<synchronous>, transform_indices = @transform_8, window_bounds = array<i64: 1, 512>}, {pipeline_mode = #tpu.pipeline_mode<synchronous>, transform_indices = @transform_9, window_bounds = array<i64: 512, 128>}, {pipeline_mode = #tpu.pipeline_mode<synchronous>, transform_indices = @transform_10, window_bounds = array<i64: 1, 128>}, {transform_indices = @transform_11, window_bounds = array<i64: 16, 128>}]} {
    %c0 = arith.constant 0 : index
    %c0_0 = arith.constant 0 : index
    %0 = vector.load %arg1[%c0, %c0_0] : memref<16x128xf32, #tpu.memory_space<vmem>>, vector<16x128xf32>
    %c0_1 = arith.constant 0 : index
    %c0_2 = arith.constant 0 : index
    %1 = vector.load %arg2[%c0_1, %c0_2] : memref<128x512xf32, #tpu.memory_space<vmem>>, vector<128x512xf32>
    %cst = arith.constant dense<0.000000e+00> : vector<16x512xf32>
    %2 = tpu.matmul %0, %1, %cst {dimension_numbers = #tpu.dot_dimension_numbers<[1], [0], [0], [1], [0, 0, 1, 1], [], []>} : vector<16x128xf32>, vector<128x512xf32>, vector<16x512xf32> -> vector<16x512xf32>
    %c0_3 = arith.constant 0 : index
    %c0_4 = arith.constant 0 : index
    %3 = vector.load %arg3[%c0_3, %c0_4] : memref<1x512xf32, #tpu.memory_space<vmem>>, vector<1x512xf32>
    %4 = vector.broadcast %3 : vector<1x512xf32> to vector<16x512xf32>
    %5 = arith.addf %2, %4 : vector<16x512xf32>
    %cst_5 = arith.constant 0.000000e+00 : f32
    %6 = vector.broadcast %cst_5 : f32 to vector<16x512xf32>
    %7 = arith.maximumf %5, %6 : vector<16x512xf32>
    %c0_6 = arith.constant 0 : index
    %c0_7 = arith.constant 0 : index
    %8 = vector.load %arg4[%c0_6, %c0_7] : memref<512x256xf32, #tpu.memory_space<vmem>>, vector<512x256xf32>
    %cst_8 = arith.constant dense<0.000000e+00> : vector<16x256xf32>
    %9 = tpu.matmul %7, %8, %cst_8 {dimension_numbers = #tpu.dot_dimension_numbers<[1], [0], [0], [1], [0, 0, 1, 1], [], []>} : vector<16x512xf32>, vector<512x256xf32>, vector<16x256xf32> -> vector<16x256xf32>
    %c0_9 = arith.constant 0 : index
    %c0_10 = arith.constant 0 : index
    %10 = vector.load %arg5[%c0_9, %c0_10] : memref<1x256xf32, #tpu.memory_space<vmem>>, vector<1x256xf32>
    %11 = vector.broadcast %10 : vector<1x256xf32> to vector<16x256xf32>
    %12 = arith.addf %9, %11 : vector<16x256xf32>
    %cst_11 = arith.constant 0.000000e+00 : f32
    %13 = vector.broadcast %cst_11 : f32 to vector<16x256xf32>
    %14 = arith.maximumf %12, %13 : vector<16x256xf32>
    %c0_12 = arith.constant 0 : index
    %c0_13 = arith.constant 0 : index
    %15 = vector.load %arg6[%c0_12, %c0_13] : memref<256x256xf32, #tpu.memory_space<vmem>>, vector<256x256xf32>
    %cst_14 = arith.constant dense<0.000000e+00> : vector<16x256xf32>
    %16 = tpu.matmul %14, %15, %cst_14 {dimension_numbers = #tpu.dot_dimension_numbers<[1], [0], [0], [1], [0, 0, 1, 1], [], []>} : vector<16x256xf32>, vector<256x256xf32>, vector<16x256xf32> -> vector<16x256xf32>
    %c0_15 = arith.constant 0 : index
    %c0_16 = arith.constant 0 : index
    %17 = vector.load %arg7[%c0_15, %c0_16] : memref<1x256xf32, #tpu.memory_space<vmem>>, vector<1x256xf32>
    %18 = vector.broadcast %17 : vector<1x256xf32> to vector<16x256xf32>
    %19 = arith.addf %16, %18 : vector<16x256xf32>
    %cst_17 = arith.constant 0.000000e+00 : f32
    %20 = vector.broadcast %cst_17 : f32 to vector<16x256xf32>
    %21 = arith.maximumf %19, %20 : vector<16x256xf32>
    %c0_18 = arith.constant 0 : index
    %c0_19 = arith.constant 0 : index
    %22 = vector.load %arg8[%c0_18, %c0_19] : memref<256x512xf32, #tpu.memory_space<vmem>>, vector<256x512xf32>
    %cst_20 = arith.constant dense<0.000000e+00> : vector<16x512xf32>
    %23 = tpu.matmul %21, %22, %cst_20 {dimension_numbers = #tpu.dot_dimension_numbers<[1], [0], [0], [1], [0, 0, 1, 1], [], []>} : vector<16x256xf32>, vector<256x512xf32>, vector<16x512xf32> -> vector<16x512xf32>
    %c0_21 = arith.constant 0 : index
    %c0_22 = arith.constant 0 : index
    %24 = vector.load %arg9[%c0_21, %c0_22] : memref<1x512xf32, #tpu.memory_space<vmem>>, vector<1x512xf32>
    %25 = vector.broadcast %24 : vector<1x512xf32> to vector<16x512xf32>
    %26 = arith.addf %23, %25 : vector<16x512xf32>
    %cst_23 = arith.constant 0.000000e+00 : f32
    %27 = vector.broadcast %cst_23 : f32 to vector<16x512xf32>
    %28 = arith.maximumf %26, %27 : vector<16x512xf32>
    %c0_24 = arith.constant 0 : index
    %c0_25 = arith.constant 0 : index
    %29 = vector.load %arg10[%c0_24, %c0_25] : memref<512x128xf32, #tpu.memory_space<vmem>>, vector<512x128xf32>
    %cst_26 = arith.constant dense<0.000000e+00> : vector<16x128xf32>
    %30 = tpu.matmul %28, %29, %cst_26 {dimension_numbers = #tpu.dot_dimension_numbers<[1], [0], [0], [1], [0, 0, 1, 1], [], []>} : vector<16x512xf32>, vector<512x128xf32>, vector<16x128xf32> -> vector<16x128xf32>
    %c0_27 = arith.constant 0 : index
    %c0_28 = arith.constant 0 : index
    %31 = vector.load %arg11[%c0_27, %c0_28] : memref<1x128xf32, #tpu.memory_space<vmem>>, vector<1x128xf32>
    %32 = vector.broadcast %31 : vector<1x128xf32> to vector<16x128xf32>
    %33 = arith.addf %30, %32 : vector<16x128xf32>
    %c0_29 = arith.constant 0 : index
    %c0_30 = arith.constant 0 : index
    %34 = vector.load %arg12[%c0_29, %c0_30] : memref<16x128xf32, #tpu.memory_space<vmem>>, vector<16x128xf32>
    tpu.vector_store %arg12[%c0_29, %c0_30], %33 {strides = array<i32>} : memref<16x128xf32, #tpu.memory_space<vmem>>, vector<16x128xf32>,
    return
  }
  func.func @transform_0(%arg0: i32) -> (i32, i32) {
    %c0_i32 = arith.constant 0 : i32
    %c0_i32_0 = arith.constant 0 : i32
    return %arg0, %c0_i32 : i32, i32
  }
  func.func @transform_1(%arg0: i32) -> (i32, i32) {
    %c0_i32 = arith.constant 0 : i32
    %c0_i32_0 = arith.constant 0 : i32
    %c0_i32_1 = arith.constant 0 : i32
    return %c0_i32, %c0_i32_0 : i32, i32
  }
  func.func @transform_2(%arg0: i32) -> (i32, i32) {
    %c0_i32 = arith.constant 0 : i32
    %c0_i32_0 = arith.constant 0 : i32
    %c0_i32_1 = arith.constant 0 : i32
    return %c0_i32, %c0_i32_0 : i32, i32
  }
  func.func @transform_3(%arg0: i32) -> (i32, i32) {
    %c0_i32 = arith.constant 0 : i32
    %c0_i32_0 = arith.constant 0 : i32
    %c0_i32_1 = arith.constant 0 : i32
    return %c0_i32, %c0_i32_0 : i32, i32
  }
  func.func @transform_4(%arg0: i32) -> (i32, i32) {
    %c0_i32 = arith.constant 0 : i32
    %c0_i32_0 = arith.constant 0 : i32
    %c0_i32_1 = arith.constant 0 : i32
    return %c0_i32, %c0_i32_0 : i32, i32
  }
  func.func @transform_5(%arg0: i32) -> (i32, i32) {
    %c0_i32 = arith.constant 0 : i32
    %c0_i32_0 = arith.constant 0 : i32
    %c0_i32_1 = arith.constant 0 : i32
    return %c0_i32, %c0_i32_0 : i32, i32
  }
  func.func @transform_6(%arg0: i32) -> (i32, i32) {
    %c0_i32 = arith.constant 0 : i32
    %c0_i32_0 = arith.constant 0 : i32
    %c0_i32_1 = arith.constant 0 : i32
    return %c0_i32, %c0_i32_0 : i32, i32
  }
  func.func @transform_7(%arg0: i32) -> (i32, i32) {
    %c0_i32 = arith.constant 0 : i32
    %c0_i32_0 = arith.constant 0 : i32
    %c0_i32_1 = arith.constant 0 : i32
    return %c0_i32, %c0_i32_0 : i32, i32
  }
  func.func @transform_8(%arg0: i32) -> (i32, i32) {
    %c0_i32 = arith.constant 0 : i32
    %c0_i32_0 = arith.constant 0 : i32
    %c0_i32_1 = arith.constant 0 : i32
    return %c0_i32, %c0_i32_0 : i32, i32
  }
  func.func @transform_9(%arg0: i32) -> (i32, i32) {
    %c0_i32 = arith.constant 0 : i32
    %c0_i32_0 = arith.constant 0 : i32
    %c0_i32_1 = arith.constant 0 : i32
    return %c0_i32, %c0_i32_0 : i32, i32
  }
  func.func @transform_10(%arg0: i32) -> (i32, i32) {
    %c0_i32 = arith.constant 0 : i32
    %c0_i32_0 = arith.constant 0 : i32
    %c0_i32_1 = arith.constant 0 : i32
    return %c0_i32, %c0_i32_0 : i32, i32
  }
  func.func @transform_11(%arg0: i32) -> (i32, i32) {
    %c0_i32 = arith.constant 0 : i32
    %c0_i32_0 = arith.constant 0 : i32
    return %arg0, %c0_i32 : i32, i32
  }
}

</mosaic_0001>

<llo_original>
// kernel: tile.38
$region0: #{tile.38}
  #allocation0 [shape = 's32[1]{0}', space=sflag, size = 0x4, scoped, tag = 'scoped memory for tile.38']
  %s0 = inlined_call_operand.vmem [shape: f32[64], index: 0, kind: input, shape index: {}]
  %s1 = inlined_call_operand.vmem [shape: f32[4,64], index: 1, kind: output, shape index: {}]
  // Predicated region
  $region2: #{tile.38} parent=0 // pred_check
    _
  $region3: #{tile.38} parent=0 // pred_check_branch
    %3 = sbr.rel (0) target = $region5
  $region4: #{tile.38} parent=0 // pred_region
    _
  $region5: #{tile.38} parent=0 // pred_fallthru
    _
  %v4 = vld [vmem:[%s0] ss:$0 sm:$0xff]
  %5 = vst [vmem:[%s1] sm:$0xf] %v4

// kernel: tile.39
$region0: #{tile.39}
  %s0 = inlined_call_operand.vmem [shape: f32[4,64], index: 0, kind: input, shape index: {}]
  %s1 = inlined_call_operand.hbm [shape: f32[1,256], index: 1, kind: output, shape index: {}]
  $region1: #{tile.39} parent=0
    #allocation0 [shape = 'u8[1024]{0}', space=vmem, size = 0x400, scoped, tag = 'operand span for operand 1']
    #allocation1 [shape = 's32[1]{0}', space=sflag, size = 0x4, scoped, tag = 'scoped memory for tile.39']
    #allocation2 [shape = 'u8[8192]{0}', space=vmem, size = 0x2000, scoped, tag = 'scoped mem for output reshape']
    #allocation3 [shape = 'u8[4096]{0}', space=vmem, size = 0x1000, scoped, tag = 'scoped mem for input reshape']
    %2 = vsyncpa [#allocation1], 0
    %s4 = sshllo.u32 0, 4
    %v5 = vld [vmem:[%s0] sm:%s4]
    %6 = vst [vmem:[#allocation3] sm:%s4] %v5
    %s7 = smov 3
    %v8 = vld [vmem:[#allocation3] ss:$2 sm:%s7]
    %vm9 = vcmask 523264
    %10 = vst.msk [vmem:[#allocation2] ss:$8 sm:$0x3] %vm9, %v8
    %s11 = scalar_lea.vmem [#allocation3], 1
    %s12 = smov 3
    %v13 = vld [vmem:[%s11] ss:$2 sm:%s12]
    %14 = vrot.lane.b32.xlu0 %v13, 64
    %v15 = vpop.permute.xlu0 %14
    %vm16 = vcmask 1048064
    %17 = vst.msk [vmem:[#allocation2] ss:$8 sm:$0x3] %vm16, %v15
    %s19 = sshllo.u32 0, 1
    %v21 = vld [vmem:[#allocation2] sm:%s19]
    %s22 = sshllo.u32 0, 1
    %23 = vst [vmem:[#allocation0] sm:%s22] %v21
    %s24 = scalar_lea.vmem [#allocation2], 8
    %v25 = vld [vmem:[%s24] sm:%s19]
    %s26 = sshllo.u32 0, 1
    %s27 = scalar_lea.vmem [#allocation0], 1
    %28 = vst [vmem:[%s27] sm:%s26] %v25
    %s30 = ssub.s32 32, 32
    %31 = vsyncadd [#allocation1], %s30
    %s33 = sshll.u32 [#allocation0], 4
    %s34 = int_to_ptr.vmem [resolvable:$true] %s33
    %36 = dma.vmem_to_hbm [thread:$0]  %s34, 32, %s1, [#allocation1]
    %37 = dma.done [#allocation1], 32
    %38 = vsyncpa [#allocation1], 1

// kernel: tile.48
$region0: #{tile.48}
  #allocation0 [shape = 's32[1]{0}', space=sflag, size = 0x4, scoped, tag = 'scoped memory for tile.48']
  %s0 = inlined_call_operand.vmem [shape: f32[32], index: 0, kind: input, shape index: {}]
  %s1 = inlined_call_operand.vmem [shape: f32[4,32], index: 1, kind: output, shape index: {}]
  // Predicated region
  $region2: #{tile.48} parent=0 // pred_check
    _
  $region3: #{tile.48} parent=0 // pred_check_branch
    %3 = sbr.rel (0) target = $region5
  $region4: #{tile.48} parent=0 // pred_region
    _
  $region5: #{tile.48} parent=0 // pred_fallthru
    _
  %v4 = vld [vmem:[%s0] ss:$0 sm:$0xff]
  %5 = vst [vmem:[%s1] sm:$0xf] %v4

// kernel: tile.49
$region0: #{tile.49}
  %s0 = inlined_call_operand.vmem [shape: f32[4,32], index: 0, kind: input, shape index: {}]
  %s1 = inlined_call_operand.hbm [shape: f32[1,128], index: 1, kind: output, shape index: {}]
  $region1: #{tile.49} parent=0
    #allocation0 [shape = 'u8[512]{0}', space=vmem, size = 0x400, scoped, tag = 'operand span for operand 1']
    #allocation1 [shape = 's32[1]{0}', space=sflag, size = 0x4, scoped, tag = 'scoped memory for tile.49']
    #allocation2 [shape = 'u8[4096]{0}', space=vmem, size = 0x1000, scoped, tag = 'scoped mem for output reshape']
    #allocation3 [shape = 'u8[4096]{0}', space=vmem, size = 0x1000, scoped, tag = 'scoped mem for input reshape']
    %2 = vsyncpa [#allocation1], 0
    %s4 = sshllo.u32 0, 4
    %v5 = vld [vmem:[%s0] sm:%s4]
    %6 = vst [vmem:[#allocation3] sm:%s4] %v5
    %v7 = vld [vmem:[#allocation3] sm:$0x1]
    %vm8 = vcmask 261120
    %9 = vst.msk [vmem:[#allocation2] sm:$0x1] %vm8, %v7
    %s10 = scalar_lea.vmem [#allocation3], 3
    %v11 = vld [vmem:[%s10] sm:$0x1]
    %12 = vrot.lane.b32.xlu0 %v11, 96
    %v13 = vpop.permute.xlu0 %12
    %vm14 = vcmask 1048320
    %15 = vst.msk [vmem:[#allocation2] sm:$0x1] %vm14, %v13
    %s16 = scalar_lea.vmem [#allocation3], 2
    %v17 = vld [vmem:[%s16] sm:$0x1]
    %18 = vrot.lane.b32.xlu0 %v17, 64
    %v19 = vpop.permute.xlu0 %18
    %vm20 = vcmask 785920
    %21 = vst.msk [vmem:[#allocation2] sm:$0x1] %vm20, %v19
    %s22 = scalar_lea.vmem [#allocation3], 1
    %v23 = vld [vmem:[%s22] sm:$0x1]
    %24 = vrot.lane.b32.xlu0 %v23, 32
    %v25 = vpop.permute.xlu0 %24
    %vm26 = vcmask 523520
    %27 = vst.msk [vmem:[#allocation2] sm:$0x1] %vm26, %v25
    %s29 = sshllo.u32 0, 1
    %v31 = vld [vmem:[#allocation2] sm:%s29]
    %s32 = sshllo.u32 0, 1
    %33 = vst [vmem:[#allocation0] sm:%s32] %v31
    %s35 = ssub.s32 16, 16
    %36 = vsyncadd [#allocation1], %s35
    %s38 = sshll.u32 [#allocation0], 4
    %s39 = int_to_ptr.vmem [resolvable:$true] %s38
    %41 = dma.vmem_to_hbm [thread:$0]  %s39, 16, %s1, [#allocation1]
    %42 = dma.done [#allocation1], 16
    %43 = vsyncpa [#allocation1], 1

// kernel: tile.28
$region0: #{tile.28}
  #allocation2 [shape = 's32[1]{0}', space=sflag, size = 0x4, scoped, tag = 'scoped memory for tile.28']
  %s0 = inlined_call_operand.vmem [shape: f32[128], index: 0, kind: input, shape index: {}]
  %s1 = inlined_call_operand.hbm [shape: f32[4,128], index: 1, kind: output, shape index: {}]
  $region1: #{tile.28} parent=0
    #allocation0 [shape = 'u8[2048]{0}', space=vmem, size = 0x800, scoped, tag = 'operand span for operand 1']
    #allocation1 [shape = 's32[1]{0}', space=sflag, size = 0x4, scoped, tag = 'scoped memory for tile.28']
    %2 = vsyncpa [#allocation1], 0
    // Predicated region
    $region2: #{tile.28} parent=1 // pred_check
      _
    $region3: #{tile.28} parent=1 // pred_check_branch
      %4 = sbr.rel (0) target = $region5
    $region4: #{tile.28} parent=1 // pred_region
      _
    $region5: #{tile.28} parent=1 // pred_fallthru
      _
    %v5 = vld [vmem:[%s0] ss:$0 sm:$0xff]
    %6 = vst [vmem:[#allocation0] sm:$0xf] %v5
    %s8 = ssub.s32 64, 64
    %9 = vsyncadd [#allocation1], %s8
    %s11 = sshll.u32 [#allocation0], 4
    %s12 = int_to_ptr.vmem [resolvable:$true] %s11
    %14 = dma.vmem_to_hbm [thread:$0]  %s12, 64, %s1, [#allocation1]
    %15 = dma.done [#allocation1], 64
    %16 = vsyncpa [#allocation1], 1

// kernel: autoencoder_forward.1
$region0: #{autoencoder_forward.1}
  #allocation0 [shape = 'u32[]', space=smem, size = 0x4, offset = 0x4, fixed_abs, tag = 'smem constant byte address 0x4 - core index']
  #allocation1 [shape = 'u32[144,128]{1,0:T(1,128)}', space=vmem, size = 0x12000, scoped, tag = 'internal scratch']
  %s0 = inlined_call_operand.hbm [shape: f32[21,128], index: 0, kind: input, shape index: {}]
  %s1 = inlined_call_operand.hbm [shape: f32[128,512], index: 1, kind: input, shape index: {}]
  %s2 = inlined_call_operand.hbm [shape: f32[1,512], index: 2, kind: input, shape index: {}]
  %s3 = inlined_call_operand.hbm [shape: f32[512,256], index: 3, kind: input, shape index: {}]
  %s4 = inlined_call_operand.hbm [shape: f32[1,256], index: 4, kind: input, shape index: {}]
  %s5 = inlined_call_operand.hbm [shape: f32[256,256], index: 5, kind: input, shape index: {}]
  %s6 = inlined_call_operand.hbm [shape: f32[1,256], index: 6, kind: input, shape index: {}]
  %s7 = inlined_call_operand.hbm [shape: f32[256,512], index: 7, kind: input, shape index: {}]
  %s8 = inlined_call_operand.hbm [shape: f32[1,512], index: 8, kind: input, shape index: {}]
  %s9 = inlined_call_operand.hbm [shape: f32[512,128], index: 9, kind: input, shape index: {}]
  %s10 = inlined_call_operand.hbm [shape: f32[1,128], index: 10, kind: input, shape index: {}]
  %s11 = inlined_call_operand.hbm [shape: f32[21,128], index: 11, kind: output, shape index: {}]
  %s12 = sld [smem:[#allocation0]]
  $region121: #{autoencoder_forward.1} parent=0
    _
  %s14 = ssub.s32 1, %s12
  %s15 = scalar_select 0, %s14, %s12
  $region1: #{autoencoder_forward.1} parent=0
    #allocation2 [shape = 'u8[16384]{0}', space=vmem, size = 0x4000, scoped, tag = 'input window, operand 0']
    #allocation3 [shape = 's32[2]{0}', space=sflag, size = 0x8, scoped, tag = 'scoped memory for autoencoder_forward.1']
    #allocation4 [shape = 's32[2]{0}', space=sflag, size = 0x8, scoped, tag = 'scoped memory for autoencoder_forward.1']
    #allocation5 [shape = 'u8[262144]{0}', space=vmem, size = 0x40000, scoped, tag = 'input window, operand 1, single buffered']
    #allocation6 [shape = 's32[1]{0}', space=sflag, size = 0x4, scoped, tag = 'scoped memory for autoencoder_forward.1']
    #allocation7 [shape = 'u8[2048]{0}', space=vmem, size = 0x800, scoped, tag = 'input window, operand 2, single buffered']
    #allocation8 [shape = 'u8[524288]{0}', space=vmem, size = 0x80000, scoped, tag = 'input window, operand 3, single buffered']
    #allocation9 [shape = 's32[1]{0}', space=sflag, size = 0x4, scoped, tag = 'scoped memory for autoencoder_forward.1']
    #allocation10 [shape = 'u8[1024]{0}', space=vmem, size = 0x400, scoped, tag = 'input window, operand 4, single buffered']
    #allocation11 [shape = 'u8[262144]{0}', space=vmem, size = 0x40000, scoped, tag = 'input window, operand 5, single buffered']
    #allocation12 [shape = 's32[1]{0}', space=sflag, size = 0x4, scoped, tag = 'scoped memory for autoencoder_forward.1']
    #allocation13 [shape = 'u8[1024]{0}', space=vmem, size = 0x400, scoped, tag = 'input window, operand 6, single buffered']
    #allocation14 [shape = 'u8[524288]{0}', space=vmem, size = 0x80000, scoped, tag = 'input window, operand 7, single buffered']
    #allocation15 [shape = 's32[1]{0}', space=sflag, size = 0x4, scoped, tag = 'scoped memory for autoencoder_forward.1']
    #allocation16 [shape = 'u8[2048]{0}', space=vmem, size = 0x800, scoped, tag = 'input window, operand 8, single buffered']
    #allocation17 [shape = 'u8[262144]{0}', space=vmem, size = 0x40000, scoped, tag = 'input window, operand 9, single buffered']
    #allocation18 [shape = 's32[1]{0}', space=sflag, size = 0x4, scoped, tag = 'scoped memory for autoencoder_forward.1']
    #allocation19 [shape = 'u8[512]{0}', space=vmem, size = 0x400, scoped, tag = 'input window, operand 10, single buffered']
    #allocation20 [shape = 'u8[16384]{0}', space=vmem, size = 0x4000, scoped, tag = 'output window, operand 0']
    %16 = vsyncpa [#allocation3], 0
    %s17 = scalar_lea.sflag [#allocation3], 1
    %18 = vsyncpa %s17, 0
    %19 = vsyncpa [#allocation6], 0
    %20 = vsyncpa [#allocation9], 0
    %21 = vsyncpa [#allocation12], 0
    %22 = vsyncpa [#allocation15], 0
    %23 = vsyncpa [#allocation18], 0
    %24 = vsyncpa [#allocation4], 0
    %s25 = scalar_lea.sflag [#allocation4], 1
    %26 = vsyncpa %s25, 0
    loop: start=0, step=1, limit=4
    $region2: #{autoencoder_forward.1} parent=1 // loop_pre_header
      _
    $region3: #{autoencoder_forward.1} parent=1 // loop_header
      %s28 = sphi 0, %s32
      %p29 = scmp.ge.s32.totalorder %s28, 4
      %s38 = sphi 0, %s40
      %s41 = sphi 0, %s38
      %s42 = sphi 0, %s41
      %s58 = sphi 0, %s42
      %s62 = sphi 0, %s62
      %s64 = sphi 0, %s62
      %s65 = sphi 0, %s64
      %s79 = sphi 0, %s65
      %s83 = sphi 0, %s83
      %s85 = sphi 0, %s83
      %s86 = sphi 0, %s85
      %s100 = sphi 0, %s86
      %s104 = sphi 0, %s104
      %s106 = sphi 0, %s104
      %s107 = sphi 0, %s106
      %s121 = sphi 0, %s107
      %s125 = sphi 0, %s125
      %s127 = sphi 0, %s125
      %s128 = sphi 0, %s127
      %s142 = sphi 0, %s128
      %s146 = sphi 0, %s146
      %s148 = sphi 0, %s146
      %s149 = sphi 0, %s148
      %s163 = sphi 0, %s149
      %s167 = sphi 0, %s167
      %s169 = sphi 0, %s167
      %s170 = sphi 0, %s169
      %s184 = sphi 0, %s170
      %s188 = sphi 0, %s188
      %s190 = sphi 0, %s188
      %s191 = sphi 0, %s190
      %s205 = sphi 0, %s191
      %s209 = sphi 0, %s209
      %s211 = sphi 0, %s209
      %s212 = sphi 0, %s211
      %s226 = sphi 0, %s212
      %s230 = sphi 0, %s230
      %s232 = sphi 0, %s230
      %s233 = sphi 0, %s232
      %s247 = sphi 0, %s233
      %s251 = sphi 0, %s251
      %s253 = sphi 0, %s251
      %s254 = sphi 0, %s253
      %s268 = sphi 0, %s254
      %s274 = sphi 0, %s276
      %s277 = sphi 0, %s274
      %s278 = sphi 0, %s277
      %s294 = sphi 0, %s278
    $region4: #{autoencoder_forward.1} parent=1 // loop_header_branch
      %31 = sbr.rel (%p29) target = $region8
    $region5: #{autoencoder_forward.1} parent=1 // loop_body
      %s33 = ssub.s32 %s28, 1
      %s34 = ssub.s32 %s28, 2
      %s35 = sadd.s32 %s28, 1
      %s36 = ssub.s32 %s28, %s35
      %p37 = scmp.eq.s32.totalorder %s36, 0
      %s39 = sadd.s32 %s38, 1
      %s40 = scalar_select %p37, %s38, %s39
      %p43 = pneg %p37
      %p44 = scmp.eq.s32.totalorder %s28, 1
      %p45 = por %p43, %p44
      %p46 = scmp.ne.s32.totalorder %s38, %s41
      %p47 = scmp.eq.s32.totalorder %s28, 0
      %p48 = por %p46, %p47
      %p49 = scmp.ne.s32.totalorder %s38, %s41
      %p50 = scmp.eq.s32.totalorder %s33, 1
      %p51 = por %p49, %p50
      %p52 = scmp.ne.s32.totalorder %s41, %s42
      %p53 = scmp.eq.s32.totalorder %s33, 0
      %p54 = por %p52, %p53
      %p55 = scmp.ne.s32.totalorder %s41, %s42
      %p56 = scmp.eq.s32.totalorder %s34, 1
      %p57 = por %p55, %p56
      %p59 = scmp.ne.s32.totalorder %s42, %s58
      %p60 = scmp.eq.s32.totalorder %s34, 0
      %p61 = por %p59, %p60
      %s63 = sadd.s32 %s62, 1
      %p66 = scmp.eq.s32.totalorder %s28, 1
      %p67 = scmp.ne.s32.totalorder %s62, %s64
      %p68 = scmp.eq.s32.totalorder %s28, 0
      %p69 = por %p67, %p68
      %p70 = scmp.ne.s32.totalorder %s62, %s64
      %p71 = scmp.eq.s32.totalorder %s33, 1
      %p72 = por %p70, %p71
      %p73 = scmp.ne.s32.totalorder %s64, %s65
      %p74 = scmp.eq.s32.totalorder %s33, 0
      %p75 = por %p73, %p74
      %p76 = scmp.ne.s32.totalorder %s64, %s65
      %p77 = scmp.eq.s32.totalorder %s34, 1
      %p78 = por %p76, %p77
      %p80 = scmp.ne.s32.totalorder %s65, %s79
      %p81 = scmp.eq.s32.totalorder %s34, 0
      %p82 = por %p80, %p81
      %s84 = sadd.s32 %s83, 1
      %p87 = scmp.eq.s32.totalorder %s28, 1
      %p88 = scmp.ne.s32.totalorder %s83, %s85
      %p89 = scmp.eq.s32.totalorder %s28, 0
      %p90 = por %p88, %p89
      %p91 = scmp.ne.s32.totalorder %s83, %s85
      %p92 = scmp.eq.s32.totalorder %s33, 1
      %p93 = por %p91, %p92
      %p94 = scmp.ne.s32.totalorder %s85, %s86
      %p95 = scmp.eq.s32.totalorder %s33, 0
      %p96 = por %p94, %p95
      %p97 = scmp.ne.s32.totalorder %s85, %s86
      %p98 = scmp.eq.s32.totalorder %s34, 1
      %p99 = por %p97, %p98
      %p101 = scmp.ne.s32.totalorder %s86, %s100
      %p102 = scmp.eq.s32.totalorder %s34, 0
      %p103 = por %p101, %p102
      %s105 = sadd.s32 %s104, 1
      %p108 = scmp.eq.s32.totalorder %s28, 1
      %p109 = scmp.ne.s32.totalorder %s104, %s106
      %p110 = scmp.eq.s32.totalorder %s28, 0
      %p111 = por %p109, %p110
      %p112 = scmp.ne.s32.totalorder %s104, %s106
      %p113 = scmp.eq.s32.totalorder %s33, 1
      %p114 = por %p112, %p113
      %p115 = scmp.ne.s32.totalorder %s106, %s107
      %p116 = scmp.eq.s32.totalorder %s33, 0
      %p117 = por %p115, %p116
      %p118 = scmp.ne.s32.totalorder %s106, %s107
      %p119 = scmp.eq.s32.totalorder %s34, 1
      %p120 = por %p118, %p119
      %p122 = scmp.ne.s32.totalorder %s107, %s121
      %p123 = scmp.eq.s32.totalorder %s34, 0
      %p124 = por %p122, %p123
      %s126 = sadd.s32 %s125, 1
      %p129 = scmp.eq.s32.totalorder %s28, 1
      %p130 = scmp.ne.s32.totalorder %s125, %s127
      %p131 = scmp.eq.s32.totalorder %s28, 0
      %p132 = por %p130, %p131
      %p133 = scmp.ne.s32.totalorder %s125, %s127
      %p134 = scmp.eq.s32.totalorder %s33, 1
      %p135 = por %p133, %p134
      %p136 = scmp.ne.s32.totalorder %s127, %s128
      %p137 = scmp.eq.s32.totalorder %s33, 0
      %p138 = por %p136, %p137
      %p139 = scmp.ne.s32.totalorder %s127, %s128
      %p140 = scmp.eq.s32.totalorder %s34, 1
      %p141 = por %p139, %p140
      %p143 = scmp.ne.s32.totalorder %s128, %s142
      %p144 = scmp.eq.s32.totalorder %s34, 0
      %p145 = por %p143, %p144
      %s147 = sadd.s32 %s146, 1
      %p150 = scmp.eq.s32.totalorder %s28, 1
      %p151 = scmp.ne.s32.totalorder %s146, %s148
      %p152 = scmp.eq.s32.totalorder %s28, 0
      %p153 = por %p151, %p152
      %p154 = scmp.ne.s32.totalorder %s146, %s148
      %p155 = scmp.eq.s32.totalorder %s33, 1
      %p156 = por %p154, %p155
      %p157 = scmp.ne.s32.totalorder %s148, %s149
      %p158 = scmp.eq.s32.totalorder %s33, 0
      %p159 = por %p157, %p158
      %p160 = scmp.ne.s32.totalorder %s148, %s149
      %p161 = scmp.eq.s32.totalorder %s34, 1
      %p162 = por %p160, %p161
      %p164 = scmp.ne.s32.totalorder %s149, %s163
      %p165 = scmp.eq.s32.totalorder %s34, 0
      %p166 = por %p164, %p165
      %s168 = sadd.s32 %s167, 1
      %p171 = scmp.eq.s32.totalorder %s28, 1
      %p172 = scmp.ne.s32.totalorder %s167, %s169
      %p173 = scmp.eq.s32.totalorder %s28, 0
      %p174 = por %p172, %p173
      %p175 = scmp.ne.s32.totalorder %s167, %s169
      %p176 = scmp.eq.s32.totalorder %s33, 1
      %p177 = por %p175, %p176
      %p178 = scmp.ne.s32.totalorder %s169, %s170
      %p179 = scmp.eq.s32.totalorder %s33, 0
      %p180 = por %p178, %p179
      %p181 = scmp.ne.s32.totalorder %s169, %s170
      %p182 = scmp.eq.s32.totalorder %s34, 1
      %p183 = por %p181, %p182
      %p185 = scmp.ne.s32.totalorder %s170, %s184
      %p186 = scmp.eq.s32.totalorder %s34, 0
      %p187 = por %p185, %p186
      %s189 = sadd.s32 %s188, 1
      %p192 = scmp.eq.s32.totalorder %s28, 1
      %p193 = scmp.ne.s32.totalorder %s188, %s190
      %p194 = scmp.eq.s32.totalorder %s28, 0
      %p195 = por %p193, %p194
      %p196 = scmp.ne.s32.totalorder %s188, %s190
      %p197 = scmp.eq.s32.totalorder %s33, 1
      %p198 = por %p196, %p197
      %p199 = scmp.ne.s32.totalorder %s190, %s191
      %p200 = scmp.eq.s32.totalorder %s33, 0
      %p201 = por %p199, %p200
      %p202 = scmp.ne.s32.totalorder %s190, %s191
      %p203 = scmp.eq.s32.totalorder %s34, 1
      %p204 = por %p202, %p203
      %p206 = scmp.ne.s32.totalorder %s191, %s205
      %p207 = scmp.eq.s32.totalorder %s34, 0
      %p208 = por %p206, %p207
      %s210 = sadd.s32 %s209, 1
      %p213 = scmp.eq.s32.totalorder %s28, 1
      %p214 = scmp.ne.s32.totalorder %s209, %s211
      %p215 = scmp.eq.s32.totalorder %s28, 0
      %p216 = por %p214, %p215
      %p217 = scmp.ne.s32.totalorder %s209, %s211
      %p218 = scmp.eq.s32.totalorder %s33, 1
      %p219 = por %p217, %p218
      %p220 = scmp.ne.s32.totalorder %s211, %s212
      %p221 = scmp.eq.s32.totalorder %s33, 0
      %p222 = por %p220, %p221
      %p223 = scmp.ne.s32.totalorder %s211, %s212
      %p224 = scmp.eq.s32.totalorder %s34, 1
      %p225 = por %p223, %p224
      %p227 = scmp.ne.s32.totalorder %s212, %s226
      %p228 = scmp.eq.s32.totalorder %s34, 0
      %p229 = por %p227, %p228
      %s231 = sadd.s32 %s230, 1
      %p234 = scmp.eq.s32.totalorder %s28, 1
      %p235 = scmp.ne.s32.totalorder %s230, %s232
      %p236 = scmp.eq.s32.totalorder %s28, 0
      %p237 = por %p235, %p236
      %p238 = scmp.ne.s32.totalorder %s230, %s232
      %p239 = scmp.eq.s32.totalorder %s33, 1
      %p240 = por %p238, %p239
      %p241 = scmp.ne.s32.totalorder %s232, %s233
      %p242 = scmp.eq.s32.totalorder %s33, 0
      %p243 = por %p241, %p242
      %p244 = scmp.ne.s32.totalorder %s232, %s233
      %p245 = scmp.eq.s32.totalorder %s34, 1
      %p246 = por %p244, %p245
      %p248 = scmp.ne.s32.totalorder %s233, %s247
      %p249 = scmp.eq.s32.totalorder %s34, 0
      %p250 = por %p248, %p249
      %s252 = sadd.s32 %s251, 1
      %p255 = scmp.eq.s32.totalorder %s28, 1
      %p256 = scmp.ne.s32.totalorder %s251, %s253
      %p257 = scmp.eq.s32.totalorder %s28, 0
      %p258 = por %p256, %p257
      %p259 = scmp.ne.s32.totalorder %s251, %s253
      %p260 = scmp.eq.s32.totalorder %s33, 1
      %p261 = por %p259, %p260
      %p262 = scmp.ne.s32.totalorder %s253, %s254
      %p263 = scmp.eq.s32.totalorder %s33, 0
      %p264 = por %p262, %p263
      %p265 = scmp.ne.s32.totalorder %s253, %s254
      %p266 = scmp.eq.s32.totalorder %s34, 1
      %p267 = por %p265, %p266
      %p269 = scmp.ne.s32.totalorder %s254, %s268
      %p270 = scmp.eq.s32.totalorder %s34, 0
      %p271 = por %p269, %p270
      %s272 = ssub.s32 %s28, %s35
      %p273 = scmp.eq.s32.totalorder %s272, 0
      %s275 = sadd.s32 %s274, 1
      %s276 = scalar_select %p273, %s274, %s275
      %p279 = pneg %p273
      %p280 = scmp.eq.s32.totalorder %s28, 1
      %p281 = por %p279, %p280
      %p282 = scmp.ne.s32.totalorder %s274, %s277
      %p283 = scmp.eq.s32.totalorder %s28, 0
      %p284 = por %p282, %p283
      %p285 = scmp.ne.s32.totalorder %s274, %s277
      %p286 = scmp.eq.s32.totalorder %s33, 1
      %p287 = por %p285, %p286
      %p288 = scmp.ne.s32.totalorder %s277, %s278
      %p289 = scmp.eq.s32.totalorder %s33, 0
      %p290 = por %p288, %p289
      %p291 = scmp.ne.s32.totalorder %s277, %s278
      %p292 = scmp.eq.s32.totalorder %s34, 1
      %p293 = por %p291, %p292
      %p295 = scmp.ne.s32.totalorder %s278, %s294
      %p296 = scmp.eq.s32.totalorder %s34, 0
      %p297 = por %p295, %p296
      %p298 = scmp.le.s32.totalorder 1, %s28
      %p299 = scmp.lt.s32.totalorder %s28, 3
      %p300 = pnand %p298, %p299
      %p301 = pneg %p300
      // Predicated region
      $region9: #{autoencoder_forward.1} parent=5 // pred_check
        _
      $region10: #{autoencoder_forward.1} parent=5 // pred_check_branch
        %303 = sbr.rel (%p300) target = $region12
      $region11: #{autoencoder_forward.1} parent=5 // pred_region
        %s304 = ssub.s32 %s28, 1
        // Predicated region
        $region13: #{autoencoder_forward.1} parent=11 // pred_check
          %p305 = pneg %p75
        $region14: #{autoencoder_forward.1} parent=11 // pred_check_branch
          %307 = sbr.rel (%p305) target = $region16
        $region15: #{autoencoder_forward.1} parent=11 // pred_region
          %s309 = ssub.s32 8192, 8192
          %310 = vsyncadd [#allocation6], %s309
          %s311 = sshll.u32 [#allocation5], 4
          %s312 = int_to_ptr.vmem [resolvable:$true] %s311
          %317 = dma.hbm_to_vmem [thread:$0]  %s1, 8192, %s312, [#allocation6], 512, 512, 32
        $region16: #{autoencoder_forward.1} parent=11 // pred_fallthru
          _
        // Predicated region
        $region17: #{autoencoder_forward.1} parent=11 // pred_check
          %p318 = pneg %p96
        $region18: #{autoencoder_forward.1} parent=11 // pred_check_branch
          %320 = sbr.rel (%p318) target = $region20
        $region19: #{autoencoder_forward.1} parent=11 // pred_region
          %s322 = ssub.s32 64, 64
          %323 = vsyncadd [#allocation6], %s322
          %s325 = sshll.u32 [#allocation7], 4
          %s326 = int_to_ptr.vmem [resolvable:$true] %s325
          %328 = dma.hbm_to_vmem [thread:$0]  %s2, 64, %s326, [#allocation6]
        $region20: #{autoencoder_forward.1} parent=11 // pred_fallthru
          _
        // Predicated region
        $region21: #{autoencoder_forward.1} parent=11 // pred_check
          %p329 = pneg %p117
        $region22: #{autoencoder_forward.1} parent=11 // pred_check_branch
          %331 = sbr.rel (%p329) target = $region24
        $region23: #{autoencoder_forward.1} parent=11 // pred_region
          %s333 = ssub.s32 16384, 16384
          %334 = vsyncadd [#allocation9], %s333
          %s335 = sshll.u32 [#allocation8], 4
          %s336 = int_to_ptr.vmem [resolvable:$true] %s335
          %341 = dma.hbm_to_vmem [thread:$0]  %s3, 16384, %s336, [#allocation9], 256, 256, 16
        $region24: #{autoencoder_forward.1} parent=11 // pred_fallthru
          _
        // Predicated region
        $region25: #{autoencoder_forward.1} parent=11 // pred_check
          %p342 = pneg %p138
        $region26: #{autoencoder_forward.1} parent=11 // pred_check_branch
          %344 = sbr.rel (%p342) target = $region28
        $region27: #{autoencoder_forward.1} parent=11 // pred_region
          %s346 = ssub.s32 32, 32
          %347 = vsyncadd [#allocation9], %s346
          %s349 = sshll.u32 [#allocation10], 4
          %s350 = int_to_ptr.vmem [resolvable:$true] %s349
          %352 = dma.hbm_to_vmem [thread:$0]  %s4, 32, %s350, [#allocation9]
        $region28: #{autoencoder_forward.1} parent=11 // pred_fallthru
          _
        // Predicated region
        $region29: #{autoencoder_forward.1} parent=11 // pred_check
          %p353 = pneg %p159
        $region30: #{autoencoder_forward.1} parent=11 // pred_check_branch
          %355 = sbr.rel (%p353) target = $region32
        $region31: #{autoencoder_forward.1} parent=11 // pred_region
          %s357 = ssub.s32 8192, 8192
          %358 = vsyncadd [#allocation12], %s357
          %s359 = sshll.u32 [#allocation11], 4
          %s360 = int_to_ptr.vmem [resolvable:$true] %s359
          %365 = dma.hbm_to_vmem [thread:$0]  %s5, 8192, %s360, [#allocation12], 256, 256, 16
        $region32: #{autoencoder_forward.1} parent=11 // pred_fallthru
          _
        // Predicated region
        $region33: #{autoencoder_forward.1} parent=11 // pred_check
          %p366 = pneg %p180
        $region34: #{autoencoder_forward.1} parent=11 // pred_check_branch
          %368 = sbr.rel (%p366) target = $region36
        $region35: #{autoencoder_forward.1} parent=11 // pred_region
          %s370 = ssub.s32 32, 32
          %371 = vsyncadd [#allocation12], %s370
          %s373 = sshll.u32 [#allocation13], 4
          %s374 = int_to_ptr.vmem [resolvable:$true] %s373
          %376 = dma.hbm_to_vmem [thread:$0]  %s6, 32, %s374, [#allocation12]
        $region36: #{autoencoder_forward.1} parent=11 // pred_fallthru
          _
        // Predicated region
        $region37: #{autoencoder_forward.1} parent=11 // pred_check
          %p377 = pneg %p201
        $region38: #{autoencoder_forward.1} parent=11 // pred_check_branch
          %379 = sbr.rel (%p377) target = $region40
        $region39: #{autoencoder_forward.1} parent=11 // pred_region
          %s381 = ssub.s32 16384, 16384
          %382 = vsyncadd [#allocation15], %s381
          %s383 = sshll.u32 [#allocation14], 4
          %s384 = int_to_ptr.vmem [resolvable:$true] %s383
          %389 = dma.hbm_to_vmem [thread:$0]  %s7, 16384, %s384, [#allocation15], 512, 512, 32
        $region40: #{autoencoder_forward.1} parent=11 // pred_fallthru
          _
        // Predicated region
        $region41: #{autoencoder_forward.1} parent=11 // pred_check
          %p390 = pneg %p222
        $region42: #{autoencoder_forward.1} parent=11 // pred_check_branch
          %392 = sbr.rel (%p390) target = $region44
        $region43: #{autoencoder_forward.1} parent=11 // pred_region
          %s394 = ssub.s32 64, 64
          %395 = vsyncadd [#allocation15], %s394
          %s397 = sshll.u32 [#allocation16], 4
          %s398 = int_to_ptr.vmem [resolvable:$true] %s397
          %400 = dma.hbm_to_vmem [thread:$0]  %s8, 64, %s398, [#allocation15]
        $region44: #{autoencoder_forward.1} parent=11 // pred_fallthru
          _
        // Predicated region
        $region45: #{autoencoder_forward.1} parent=11 // pred_check
          %p401 = pneg %p243
        $region46: #{autoencoder_forward.1} parent=11 // pred_check_branch
          %403 = sbr.rel (%p401) target = $region48
        $region47: #{autoencoder_forward.1} parent=11 // pred_region
          %s405 = ssub.s32 8192, 8192
          %406 = vsyncadd [#allocation18], %s405
          %s407 = sshll.u32 [#allocation17], 4
          %s408 = int_to_ptr.vmem [resolvable:$true] %s407
          %413 = dma.hbm_to_vmem [thread:$0]  %s9, 8192, %s408, [#allocation18], 128, 128, 8
        $region48: #{autoencoder_forward.1} parent=11 // pred_fallthru
          _
        // Predicated region
        $region49: #{autoencoder_forward.1} parent=11 // pred_check
          %p414 = pneg %p264
        $region50: #{autoencoder_forward.1} parent=11 // pred_check_branch
          %416 = sbr.rel (%p414) target = $region52
        $region51: #{autoencoder_forward.1} parent=11 // pred_region
          %s418 = ssub.s32 16, 16
          %419 = vsyncadd [#allocation18], %s418
          %s421 = sshll.u32 [#allocation19], 4
          %s422 = int_to_ptr.vmem [resolvable:$true] %s421
          %424 = dma.hbm_to_vmem [thread:$0]  %s10, 16, %s422, [#allocation18]
        $region52: #{autoencoder_forward.1} parent=11 // pred_fallthru
          _
      $region12: #{autoencoder_forward.1} parent=5 // pred_fallthru
        _
      %p425 = scmp.lt.s32.totalorder %s28, 2
      // Predicated region
      $region53: #{autoencoder_forward.1} parent=5 // pred_check
        %p426 = pneg %p425
      $region54: #{autoencoder_forward.1} parent=5 // pred_check_branch
        %428 = sbr.rel (%p426) target = $region56
      $region55: #{autoencoder_forward.1} parent=5 // pred_region
        // Predicated region
        $region57: #{autoencoder_forward.1} parent=55 // pred_check
          %p429 = pneg %p48
        $region58: #{autoencoder_forward.1} parent=55 // pred_check_branch
          %431 = sbr.rel (%p429) target = $region60
        $region59: #{autoencoder_forward.1} parent=55 // pred_region
          %s432 = sand.u32 %s38, 1
          %s433 = scalar_lea.sflag [#allocation3], %s432
          %s434 = sand.u32 %s38, 1
          %s435 = smul.addr %s434, 16
          %s436 = scalar_lea.vmem [#allocation2], %s435
          %s437 = smul.u32 2, %s28
          %s438 = ssub.s32 3, %s437
          %p439 = scmp.lt.s32.totalorder %s438, 2
          %s440 = scalar_select %p439, %s438, 2
          %s441 = smul.u32 128, %s440
          %s443 = ssub.s32 256, %s441
          %444 = vsyncadd %s433, %s443
          %p445 = scmp.ne.s32.totalorder 0, %s441
          %s446 = smul.addr %s437, 128
          %s447 = scalar_lea.hbm %s0, %s446
          %s448 = smul.u32 8, %s440
          %s449 = sshll.u32 %s436, 4
          %s450 = int_to_ptr.vmem [resolvable:$true] %s449
          %s451 = sshll.u32 %s448, 4
          %455 = dma.hbm_to_vmem [thread:$0]  (%p445), %s447, %s451, %s450, %s433, 128, 128, 8
        $region60: #{autoencoder_forward.1} parent=55 // pred_fallthru
          _
      $region56: #{autoencoder_forward.1} parent=5 // pred_fallthru
        _
      %p456 = scmp.le.s32.totalorder 1, %s28
      %p457 = scmp.lt.s32.totalorder %s28, 3
      %p458 = pnand %p456, %p457
      %p459 = pneg %p458
      // Predicated region
      $region61: #{autoencoder_forward.1} parent=5 // pred_check
        _
      $region62: #{autoencoder_forward.1} parent=5 // pred_check_branch
        %461 = sbr.rel (%p458) target = $region64
      $region63: #{autoencoder_forward.1} parent=5 // pred_region
        %s462 = ssub.s32 %s28, 1
        %s463 = sand.u32 %s41, 1
        %s464 = scalar_lea.sflag [#allocation3], %s463
        %s465 = sand.u32 %s41, 1
        %s466 = smul.addr %s465, 16
        %s467 = scalar_lea.vmem [#allocation2], %s466
        // Predicated region
        $region65: #{autoencoder_forward.1} parent=63 // pred_check
          %p468 = pneg %p54
        $region66: #{autoencoder_forward.1} parent=63 // pred_check_branch
          %470 = sbr.rel (%p468) target = $region68
        $region67: #{autoencoder_forward.1} parent=63 // pred_region
          %471 = dma.done %s464, 256
        $region68: #{autoencoder_forward.1} parent=63 // pred_fallthru
          _
        // Predicated region
        $region69: #{autoencoder_forward.1} parent=63 // pred_check
          %p472 = pneg %p75
        $region70: #{autoencoder_forward.1} parent=63 // pred_check_branch
          %474 = sbr.rel (%p472) target = $region72
        $region71: #{autoencoder_forward.1} parent=63 // pred_region
          %475 = dma.done [#allocation6], 8192
        $region72: #{autoencoder_forward.1} parent=63 // pred_fallthru
          _
        // Predicated region
        $region73: #{autoencoder_forward.1} parent=63 // pred_check
          %p476 = pneg %p96
        $region74: #{autoencoder_forward.1} parent=63 // pred_check_branch
          %478 = sbr.rel (%p476) target = $region76
        $region75: #{autoencoder_forward.1} parent=63 // pred_region
          %479 = dma.done [#allocation6], 64
        $region76: #{autoencoder_forward.1} parent=63 // pred_fallthru
          _
        // Predicated region
        $region77: #{autoencoder_forward.1} parent=63 // pred_check
          %p480 = pneg %p117
        $region78: #{autoencoder_forward.1} parent=63 // pred_check_branch
          %482 = sbr.rel (%p480) target = $region80
        $region79: #{autoencoder_forward.1} parent=63 // pred_region
          %483 = dma.done [#allocation9], 16384
        $region80: #{autoencoder_forward.1} parent=63 // pred_fallthru
          _
        // Predicated region
        $region81: #{autoencoder_forward.1} parent=63 // pred_check
          %p484 = pneg %p138
        $region82: #{autoencoder_forward.1} parent=63 // pred_check_branch
          %486 = sbr.rel (%p484) target = $region84
        $region83: #{autoencoder_forward.1} parent=63 // pred_region
          %487 = dma.done [#allocation9], 32
        $region84: #{autoencoder_forward.1} parent=63 // pred_fallthru
          _
        // Predicated region
        $region85: #{autoencoder_forward.1} parent=63 // pred_check
          %p488 = pneg %p159
        $region86: #{autoencoder_forward.1} parent=63 // pred_check_branch
          %490 = sbr.rel (%p488) target = $region88
        $region87: #{autoencoder_forward.1} parent=63 // pred_region
          %491 = dma.done [#allocation12], 8192
        $region88: #{autoencoder_forward.1} parent=63 // pred_fallthru
          _
        // Predicated region
        $region89: #{autoencoder_forward.1} parent=63 // pred_check
          %p492 = pneg %p180
        $region90: #{autoencoder_forward.1} parent=63 // pred_check_branch
          %494 = sbr.rel (%p492) target = $region92
        $region91: #{autoencoder_forward.1} parent=63 // pred_region
          %495 = dma.done [#allocation12], 32
        $region92: #{autoencoder_forward.1} parent=63 // pred_fallthru
          _
        // Predicated region
        $region93: #{autoencoder_forward.1} parent=63 // pred_check
          %p496 = pneg %p201
        $region94: #{autoencoder_forward.1} parent=63 // pred_check_branch
          %498 = sbr.rel (%p496) target = $region96
        $region95: #{autoencoder_forward.1} parent=63 // pred_region
          %499 = dma.done [#allocation15], 16384
        $region96: #{autoencoder_forward.1} parent=63 // pred_fallthru
          _
        // Predicated region
        $region97: #{autoencoder_forward.1} parent=63 // pred_check
          %p500 = pneg %p222
        $region98: #{autoencoder_forward.1} parent=63 // pred_check_branch
          %502 = sbr.rel (%p500) target = $region100
        $region99: #{autoencoder_forward.1} parent=63 // pred_region
          %503 = dma.done [#allocation15], 64
        $region100: #{autoencoder_forward.1} parent=63 // pred_fallthru
          _
        // Predicated region
        $region101: #{autoencoder_forward.1} parent=63 // pred_check
          %p504 = pneg %p243
        $region102: #{autoencoder_forward.1} parent=63 // pred_check_branch
          %506 = sbr.rel (%p504) target = $region104
        $region103: #{autoencoder_forward.1} parent=63 // pred_region
          %507 = dma.done [#allocation18], 8192
        $region104: #{autoencoder_forward.1} parent=63 // pred_fallthru
          _
        // Predicated region
        $region105: #{autoencoder_forward.1} parent=63 // pred_check
          %p508 = pneg %p264
        $region106: #{autoencoder_forward.1} parent=63 // pred_check_branch
          %510 = sbr.rel (%p508) target = $region108
        $region107: #{autoencoder_forward.1} parent=63 // pred_region
          %511 = dma.done [#allocation18], 16
        $region108: #{autoencoder_forward.1} parent=63 // pred_fallthru
          _
        %s512 = sand.u32 %s41, 1
        %s513 = scalar_lea.sflag [#allocation3], %s512
        %s514 = sand.u32 %s41, 1
        %s515 = smul.addr %s514, 16
        %s516 = scalar_lea.vmem [#allocation2], %s515
        %p517 = pneg %p54
        %p518 = pneg %p51
        %p519 = pneg %p75
        %p520 = pneg %p72
        %p521 = pneg %p96
        %p522 = pneg %p93
        %p523 = pneg %p117
        %p524 = pneg %p114
        %p525 = pneg %p138
        %p526 = pneg %p135
        %p527 = pneg %p159
        %p528 = pneg %p156
        %p529 = pneg %p180
        %p530 = pneg %p177
        %p531 = pneg %p201
        %p532 = pneg %p198
        %p533 = pneg %p222
        %p534 = pneg %p219
        %p535 = pneg %p243
        %p536 = pneg %p240
        %p537 = pneg %p264
        %p538 = pneg %p261
        %p539 = pneg %p290
        %p540 = pneg %p287
        %s541 = sand.u32 %s277, 1
        %s542 = scalar_lea.sflag [#allocation4], %s541
        %s543 = sand.u32 %s277, 1
        %s544 = smul.addr %s543, 16
        %s545 = scalar_lea.vmem [#allocation20], %s544
        %s546 = smul.u32 2, %s33
        %s547 = ssub.s32 3, %s546
        %p548 = scmp.lt.s32.totalorder %s547, 2
        %s549 = scalar_select %p548, %s547, 2
        %s550 = smul.u32 128, %s549
        %s551 = smul.u32 2, %s33
        %s552 = ssub.s32 3, %s551
        %p553 = scmp.lt.s32.totalorder %s552, 2
        %s554 = scalar_select %p553, %s552, 2
        %s555 = smul.u32 128, %s554
        %v556 = vld [vmem:[%s467] sm:$0xff]
        %v557 = vld [vmem:[%s467 + $0x8] sm:$0xff]
        %v558 = vld [vmem:[#allocation5] sm:$0xff]
        %v559 = vld [vmem:[#allocation5 + $0x8] sm:$0xff]
        %v560 = vld [vmem:[#allocation5 + $0x10] sm:$0xff]
        %v561 = vld [vmem:[#allocation5 + $0x18] sm:$0xff]
        %v562 = vld [vmem:[#allocation5 + $0x20] sm:$0xff]
        %v563 = vld [vmem:[#allocation5 + $0x28] sm:$0xff]
        %v564 = vld [vmem:[#allocation5 + $0x30] sm:$0xff]
        %v565 = vld [vmem:[#allocation5 + $0x38] sm:$0xff]
        %v566 = vld [vmem:[#allocation5 + $0x40] sm:$0xff]
        %v567 = vld [vmem:[#allocation5 + $0x48] sm:$0xff]
        %v568 = vld [vmem:[#allocation5 + $0x50] sm:$0xff]
        %v569 = vld [vmem:[#allocation5 + $0x58] sm:$0xff]
        %v570 = vld [vmem:[#allocation5 + $0x60] sm:$0xff]
        %v571 = vld [vmem:[#allocation5 + $0x68] sm:$0xff]
        %v572 = vld [vmem:[#allocation5 + $0x70] sm:$0xff]
        %v573 = vld [vmem:[#allocation5 + $0x78] sm:$0xff]
        %v574 = vld [vmem:[#allocation5 + $0x80] sm:$0xff]
        %v575 = vld [vmem:[#allocation5 + $0x88] sm:$0xff]
        %v576 = vld [vmem:[#allocation5 + $0x90] sm:$0xff]
        %v577 = vld [vmem:[#allocation5 + $0x98] sm:$0xff]
        %v578 = vld [vmem:[#allocation5 + $0xa0] sm:$0xff]
        %v579 = vld [vmem:[#allocation5 + $0xa8] sm:$0xff]
        %v580 = vld [vmem:[#allocation5 + $0xb0] sm:$0xff]
        %v581 = vld [vmem:[#allocation5 + $0xb8] sm:$0xff]
        %v582 = vld [vmem:[#allocation5 + $0xc0] sm:$0xff]
        %v583 = vld [vmem:[#allocation5 + $0xc8] sm:$0xff]
        %v584 = vld [vmem:[#allocation5 + $0xd0] sm:$0xff]
        %v585 = vld [vmem:[#allocation5 + $0xd8] sm:$0xff]
        %v586 = vld [vmem:[#allocation5 + $0xe0] sm:$0xff]
        %v587 = vld [vmem:[#allocation5 + $0xe8] sm:$0xff]
        %v588 = vld [vmem:[#allocation5 + $0xf0] sm:$0xff]
        %v589 = vld [vmem:[#allocation5 + $0xf8] sm:$0xff]
        %v590 = vld [vmem:[#allocation5 + $0x100] sm:$0xff]
        %v591 = vld [vmem:[#allocation5 + $0x108] sm:$0xff]
        %v592 = vld [vmem:[#allocation5 + $0x110] sm:$0xff]
        %v593 = vld [vmem:[#allocation5 + $0x118] sm:$0xff]
        %v594 = vld [vmem:[#allocation5 + $0x120] sm:$0xff]
        %v595 = vld [vmem:[#allocation5 + $0x128] sm:$0xff]
        %v596 = vld [vmem:[#allocation5 + $0x130] sm:$0xff]
        %v597 = vld [vmem:[#allocation5 + $0x138] sm:$0xff]
        %v598 = vld [vmem:[#allocation5 + $0x140] sm:$0xff]
        %v599 = vld [vmem:[#allocation5 + $0x148] sm:$0xff]
        %v600 = vld [vmem:[#allocation5 + $0x150] sm:$0xff]
        %v601 = vld [vmem:[#allocation5 + $0x158] sm:$0xff]
        %v602 = vld [vmem:[#allocation5 + $0x160] sm:$0xff]
        %v603 = vld [vmem:[#allocation5 + $0x168] sm:$0xff]
        %v604 = vld [vmem:[#allocation5 + $0x170] sm:$0xff]
        %v605 = vld [vmem:[#allocation5 + $0x178] sm:$0xff]
        %v606 = vld [vmem:[#allocation5 + $0x180] sm:$0xff]
        %v607 = vld [vmem:[#allocation5 + $0x188] sm:$0xff]
        %v608 = vld [vmem:[#allocation5 + $0x190] sm:$0xff]
        %v609 = vld [vmem:[#allocation5 + $0x198] sm:$0xff]
        %v610 = vld [vmem:[#allocation5 + $0x1a0] sm:$0xff]
        %v611 = vld [vmem:[#allocation5 + $0x1a8] sm:$0xff]
        %v612 = vld [vmem:[#allocation5 + $0x1b0] sm:$0xff]
        %v613 = vld [vmem:[#allocation5 + $0x1b8] sm:$0xff]
        %v614 = vld [vmem:[#allocation5 + $0x1c0] sm:$0xff]
        %v615 = vld [vmem:[#allocation5 + $0x1c8] sm:$0xff]
        %v616 = vld [vmem:[#allocation5 + $0x1d0] sm:$0xff]
        %v617 = vld [vmem:[#allocation5 + $0x1d8] sm:$0xff]
        %v618 = vld [vmem:[#allocation5 + $0x1e0] sm:$0xff]
        %v619 = vld [vmem:[#allocation5 + $0x1e8] sm:$0xff]
        %v620 = vld [vmem:[#allocation5 + $0x1f0] sm:$0xff]
        %v621 = vld [vmem:[#allocation5 + $0x1f8] sm:$0xff]
        %v622 = vld [vmem:[#allocation7] sm:$0xf]
        %v624 = vlaneseq
        %v625 = vshrl.u32 %v624, 7
        %v626 = vsub.s32 0, %v625
        %v627 = vrot.slane %v622, %v626
        %v628 = vlaneseq
        %v629 = vshrl.u32 %v628, 7
        %v630 = vsub.s32 1, %v629
        %v631 = vrot.slane %v622, %v630
        %v632 = vlaneseq
        %v633 = vshrl.u32 %v632, 7
        %v634 = vsub.s32 2, %v633
        %v635 = vrot.slane %v622, %v634
        %v636 = vlaneseq
        %v637 = vshrl.u32 %v636, 7
        %v638 = vsub.s32 3, %v637
        %v639 = vrot.slane %v622, %v638
        %644 = vmatprep.subr.mxu0 %v559
        %645 = vmatpush1.msra.mxu0 %v558
        %646 = vmatprep.subr.mxu0 %v563
        %647 = vmatpush1.msra.mxu0 %v562
        %648 = vmatprep.subr.mxu0 %v567
        %649 = vmatpush1.msra.mxu0 %v566
        %650 = vmatprep.subr.mxu0 %v571
        %651 = vmatpush1.msra.mxu0 %v570
        %652 = vmatprep.subr.mxu0 %v575
        %653 = vmatpush1.msra.mxu0 %v574
        %654 = vmatprep.subr.mxu0 %v579
        %655 = vmatpush1.msra.mxu0 %v578
        %656 = vmatprep.subr.mxu0 %v583
        %657 = vmatpush1.msra.mxu0 %v582
        %658 = vmatprep.subr.mxu0 %v587
        %659 = vmatpush1.msra.mxu0 %v586
        %660 = vmatprep.subr.mxu0 %v591
        %661 = vmatpush1.msra.mxu0 %v590
        %662 = vmatprep.subr.mxu0 %v595
        %663 = vmatpush1.msra.mxu0 %v594
        %664 = vmatprep.subr.mxu0 %v599
        %665 = vmatpush1.msra.mxu0 %v598
        %666 = vmatprep.subr.mxu0 %v603
        %667 = vmatpush1.msra.mxu0 %v602
        %668 = vmatprep.subr.mxu0 %v607
        %669 = vmatpush1.msra.mxu0 %v606
        %670 = vmatprep.subr.mxu0 %v611
        %671 = vmatpush1.msra.mxu0 %v610
        %672 = vmatprep.subr.mxu0 %v615
        %673 = vmatpush1.msra.mxu0 %v614
        %674 = vmatprep.subr.mxu0 %v619
        %675 = vmatpush1.msra.mxu0 %v618
        %676 = vmatprep.subr.mxu0 0.0
        %677 = vmatpush1.msra.mxu0 0.0
        %678 = vmatprep.subr.mxu0 0.0
        %679 = vmatpush1.msra.mxu0 0.0
        %680 = vmatprep.subr.mxu0 0.0
        %681 = vmatpush1.msra.mxu0 0.0
        %682 = vmatprep.subr.mxu0 0.0
        %683 = vmatpush1.msra.mxu0 0.0
        %684 = vmatprep.subr.mxu0 0.0
        %685 = vmatpush1.msra.mxu0 0.0
        %686 = vmatprep.subr.mxu0 0.0
        %687 = vmatpush1.msra.mxu0 0.0
        %688 = vmatprep.subr.mxu0 0.0
        %689 = vmatpush1.msra.mxu0 0.0
        %690 = vmatprep.subr.mxu0 0.0
        %691 = vmatpush1.msra.mxu0 0.0
        %692 = vmatprep.subr.mxu0 0.0
        %693 = vmatpush1.msra.mxu0 0.0
        %694 = vmatprep.subr.mxu0 0.0
        %695 = vmatpush1.msra.mxu0 0.0
        %696 = vmatprep.subr.mxu0 0.0
        %697 = vmatpush1.msra.mxu0 0.0
        %698 = vmatprep.subr.mxu0 0.0
        %699 = vmatpush1.msra.mxu0 0.0
        %700 = vmatprep.subr.mxu0 0.0
        %701 = vmatpush1.msra.mxu0 0.0
        %702 = vmatprep.subr.mxu0 0.0
        %703 = vmatpush1.msra.mxu0 0.0
        %704 = vmatprep.subr.mxu0 0.0
        %705 = vmatpush1.msra.mxu0 0.0
        %706 = vmatprep.subr.mxu0 0.0
        %707 = vmatpush1.msra.mxu0 0.0
        %708 = vmatprep.mubr.f32.mxu0 0.0
        %709 = vmatmul.mubr.f32.gmra.mrb[0].mxu0 %v556
        %v710 = vpop.f32.mrb[0].mxu0
        %v711 = vadd.f32 %v627, %v710
        %v712 = vpop.f32.mrb[0].mxu0
        %v713 = vadd.f32 %v631, %v712
        %714 = vmatprep.mubr.f32.mxu0 0.0
        %715 = vmatmul.mubr.f32.gmra.mrb[0].mxu0 %v557
        %v716 = vpop.f32.mrb[0].mxu0
        %v717 = vadd.f32 %v627, %v716
        %v718 = vpop.f32.mrb[0].mxu0
        %v719 = vadd.f32 %v631, %v718
        %720 = vdwg.mxu0
        %721 = vmatprep.subr.mxu0 %v561
        %722 = vmatpush1.msra.mxu0 %v560
        %723 = vmatprep.subr.mxu0 %v565
        %724 = vmatpush1.msra.mxu0 %v564
        %725 = vmatprep.subr.mxu0 %v569
        %726 = vmatpush1.msra.mxu0 %v568
        %727 = vmatprep.subr.mxu0 %v573
        %728 = vmatpush1.msra.mxu0 %v572
        %729 = vmatprep.subr.mxu0 %v577
        %730 = vmatpush1.msra.mxu0 %v576
        %731 = vmatprep.subr.mxu0 %v581
        %732 = vmatpush1.msra.mxu0 %v580
        %733 = vmatprep.subr.mxu0 %v585
        %734 = vmatpush1.msra.mxu0 %v584
        %735 = vmatprep.subr.mxu0 %v589
        %736 = vmatpush1.msra.mxu0 %v588
        %737 = vmatprep.subr.mxu0 %v593
        %738 = vmatpush1.msra.mxu0 %v592
        %739 = vmatprep.subr.mxu0 %v597
        %740 = vmatpush1.msra.mxu0 %v596
        %741 = vmatprep.subr.mxu0 %v601
        %742 = vmatpush1.msra.mxu0 %v600
        %743 = vmatprep.subr.mxu0 %v605
        %744 = vmatpush1.msra.mxu0 %v604
        %745 = vmatprep.subr.mxu0 %v609
        %746 = vmatpush1.msra.mxu0 %v608
        %747 = vmatprep.subr.mxu0 %v613
        %748 = vmatpush1.msra.mxu0 %v612
        %749 = vmatprep.subr.mxu0 %v617
        %750 = vmatpush1.msra.mxu0 %v616
        %751 = vmatprep.subr.mxu0 %v621
        %752 = vmatpush1.msra.mxu0 %v620
        %753 = vmatprep.subr.mxu0 0.0
        %754 = vmatpush1.msra.mxu0 0.0
        %755 = vmatprep.subr.mxu0 0.0
        %756 = vmatpush1.msra.mxu0 0.0
        %757 = vmatprep.subr.mxu0 0.0
        %758 = vmatpush1.msra.mxu0 0.0
        %759 = vmatprep.subr.mxu0 0.0
        %760 = vmatpush1.msra.mxu0 0.0
        %761 = vmatprep.subr.mxu0 0.0
        %762 = vmatpush1.msra.mxu0 0.0
        %763 = vmatprep.subr.mxu0 0.0
        %764 = vmatpush1.msra.mxu0 0.0
        %765 = vmatprep.subr.mxu0 0.0
        %766 = vmatpush1.msra.mxu0 0.0
        %767 = vmatprep.subr.mxu0 0.0
        %768 = vmatpush1.msra.mxu0 0.0
        %769 = vmatprep.subr.mxu0 0.0
        %770 = vmatpush1.msra.mxu0 0.0
        %771 = vmatprep.subr.mxu0 0.0
        %772 = vmatpush1.msra.mxu0 0.0
        %773 = vmatprep.subr.mxu0 0.0
        %774 = vmatpush1.msra.mxu0 0.0
        %775 = vmatprep.subr.mxu0 0.0
        %776 = vmatpush1.msra.mxu0 0.0
        %777 = vmatprep.subr.mxu0 0.0
        %778 = vmatpush1.msra.mxu0 0.0
        %779 = vmatprep.subr.mxu0 0.0
        %780 = vmatpush1.msra.mxu0 0.0
        %781 = vmatprep.subr.mxu0 0.0
        %782 = vmatpush1.msra.mxu0 0.0
        %783 = vmatprep.subr.mxu0 0.0
        %784 = vmatpush1.msra.mxu0 0.0
        %785 = vmatprep.mubr.f32.mxu0 0.0
        %786 = vmatmul.mubr.f32.gmra.mrb[0].mxu0 %v556
        %v787 = vpop.f32.mrb[0].mxu0
        %v788 = vadd.f32 %v635, %v787
        %v789 = vpop.f32.mrb[0].mxu0
        %v790 = vadd.f32 %v639, %v789
        %791 = vmatprep.mubr.f32.mxu0 0.0
        %792 = vmatmul.mubr.f32.gmra.mrb[0].mxu0 %v557
        %v793 = vpop.f32.mrb[0].mxu0
        %v794 = vadd.f32 %v635, %v793
        %v795 = vpop.f32.mrb[0].mxu0
        %v796 = vadd.f32 %v639, %v795
        %797 = vdwg.mxu0
        %v798 = vmax.f32 %v711, 0.0
        %v799 = vmax.f32 %v713, 0.0
        %v800 = vmax.f32 %v788, 0.0
        %v801 = vmax.f32 %v790, 0.0
        %v802 = vmax.f32 %v717, 0.0
        %v803 = vmax.f32 %v719, 0.0
        %v804 = vmax.f32 %v794, 0.0
        %v805 = vmax.f32 %v796, 0.0
        %v806 = vld [vmem:[#allocation8] sm:$0xff]
        %v807 = vld [vmem:[#allocation8 + $0x8] sm:$0xff]
        %v808 = vld [vmem:[#allocation8 + $0x10] sm:$0xff]
        %v809 = vld [vmem:[#allocation8 + $0x18] sm:$0xff]
        %v810 = vld [vmem:[#allocation8 + $0x20] sm:$0xff]
        %v811 = vld [vmem:[#allocation8 + $0x28] sm:$0xff]
        %v812 = vld [vmem:[#allocation8 + $0x30] sm:$0xff]
        %v813 = vld [vmem:[#allocation8 + $0x38] sm:$0xff]
        %v814 = vld [vmem:[#allocation8 + $0x40] sm:$0xff]
        %v815 = vld [vmem:[#allocation8 + $0x48] sm:$0xff]
        %v816 = vld [vmem:[#allocation8 + $0x50] sm:$0xff]
        %v817 = vld [vmem:[#allocation8 + $0x58] sm:$0xff]
        %v818 = vld [vmem:[#allocation8 + $0x60] sm:$0xff]
        %v819 = vld [vmem:[#allocation8 + $0x68] sm:$0xff]
        %v820 = vld [vmem:[#allocation8 + $0x70] sm:$0xff]
        %v821 = vld [vmem:[#allocation8 + $0x78] sm:$0xff]
        %v822 = vld [vmem:[#allocation8 + $0x80] sm:$0xff]
        %v823 = vld [vmem:[#allocation8 + $0x88] sm:$0xff]
        %v824 = vld [vmem:[#allocation8 + $0x90] sm:$0xff]
        %v825 = vld [vmem:[#allocation8 + $0x98] sm:$0xff]
        %v826 = vld [vmem:[#allocation8 + $0xa0] sm:$0xff]
        %v827 = vld [vmem:[#allocation8 + $0xa8] sm:$0xff]
        %v828 = vld [vmem:[#allocation8 + $0xb0] sm:$0xff]
        %v829 = vld [vmem:[#allocation8 + $0xb8] sm:$0xff]
        %v830 = vld [vmem:[#allocation8 + $0xc0] sm:$0xff]
        %v831 = vld [vmem:[#allocation8 + $0xc8] sm:$0xff]
        %v832 = vld [vmem:[#allocation8 + $0xd0] sm:$0xff]
        %v833 = vld [vmem:[#allocation8 + $0xd8] sm:$0xff]
        %v834 = vld [vmem:[#allocation8 + $0xe0] sm:$0xff]
        %v835 = vld [vmem:[#allocation8 + $0xe8] sm:$0xff]
        %v836 = vld [vmem:[#allocation8 + $0xf0] sm:$0xff]
        %v837 = vld [vmem:[#allocation8 + $0xf8] sm:$0xff]
        %v838 = vld [vmem:[#allocation8 + $0x100] sm:$0xff]
        %v839 = vld [vmem:[#allocation8 + $0x108] sm:$0xff]
        %v840 = vld [vmem:[#allocation8 + $0x110] sm:$0xff]
        %v841 = vld [vmem:[#allocation8 + $0x118] sm:$0xff]
        %v842 = vld [vmem:[#allocation8 + $0x120] sm:$0xff]
        %v843 = vld [vmem:[#allocation8 + $0x128] sm:$0xff]
        %v844 = vld [vmem:[#allocation8 + $0x130] sm:$0xff]
        %v845 = vld [vmem:[#allocation8 + $0x138] sm:$0xff]
        %v846 = vld [vmem:[#allocation8 + $0x140] sm:$0xff]
        %v847 = vld [vmem:[#allocation8 + $0x148] sm:$0xff]
        %v848 = vld [vmem:[#allocation8 + $0x150] sm:$0xff]
        %v849 = vld [vmem:[#allocation8 + $0x158] sm:$0xff]
        %v850 = vld [vmem:[#allocation8 + $0x160] sm:$0xff]
        %v851 = vld [vmem:[#allocation8 + $0x168] sm:$0xff]
        %v852 = vld [vmem:[#allocation8 + $0x170] sm:$0xff]
        %v853 = vld [vmem:[#allocation8 + $0x178] sm:$0xff]
        %v854 = vld [vmem:[#allocation8 + $0x180] sm:$0xff]
        %v855 = vld [vmem:[#allocation8 + $0x188] sm:$0xff]
        %v856 = vld [vmem:[#allocation8 + $0x190] sm:$0xff]
        %v857 = vld [vmem:[#allocation8 + $0x198] sm:$0xff]
        %v858 = vld [vmem:[#allocation8 + $0x1a0] sm:$0xff]
        %v859 = vld [vmem:[#allocation8 + $0x1a8] sm:$0xff]
        %v860 = vld [vmem:[#allocation8 + $0x1b0] sm:$0xff]
        %v861 = vld [vmem:[#allocation8 + $0x1b8] sm:$0xff]
        %v862 = vld [vmem:[#allocation8 + $0x1c0] sm:$0xff]
        %v863 = vld [vmem:[#allocation8 + $0x1c8] sm:$0xff]
        %v864 = vld [vmem:[#allocation8 + $0x1d0] sm:$0xff]
        %v865 = vld [vmem:[#allocation8 + $0x1d8] sm:$0xff]
        %v866 = vld [vmem:[#allocation8 + $0x1e0] sm:$0xff]
        %v867 = vld [vmem:[#allocation8 + $0x1e8] sm:$0xff]
        %v868 = vld [vmem:[#allocation8 + $0x1f0] sm:$0xff]
        %v869 = vld [vmem:[#allocation8 + $0x1f8] sm:$0xff]
        %v870 = vld [vmem:[#allocation8 + $0x200] sm:$0xff]
        %v871 = vld [vmem:[#allocation8 + $0x208] sm:$0xff]
        %v872 = vld [vmem:[#allocation8 + $0x210] sm:$0xff]
        %v873 = vld [vmem:[#allocation8 + $0x218] sm:$0xff]
        %v874 = vld [vmem:[#allocation8 + $0x220] sm:$0xff]
        %v875 = vld [vmem:[#allocation8 + $0x228] sm:$0xff]
        %v876 = vld [vmem:[#allocation8 + $0x230] sm:$0xff]
        %v877 = vld [vmem:[#allocation8 + $0x238] sm:$0xff]
        %v878 = vld [vmem:[#allocation8 + $0x240] sm:$0xff]
        %v879 = vld [vmem:[#allocation8 + $0x248] sm:$0xff]
        %v880 = vld [vmem:[#allocation8 + $0x250] sm:$0xff]
        %v881 = vld [vmem:[#allocation8 + $0x258] sm:$0xff]
        %v882 = vld [vmem:[#allocation8 + $0x260] sm:$0xff]
        %v883 = vld [vmem:[#allocation8 + $0x268] sm:$0xff]
        %v884 = vld [vmem:[#allocation8 + $0x270] sm:$0xff]
        %v885 = vld [vmem:[#allocation8 + $0x278] sm:$0xff]
        %v886 = vld [vmem:[#allocation8 + $0x280] sm:$0xff]
        %v887 = vld [vmem:[#allocation8 + $0x288] sm:$0xff]
        %v888 = vld [vmem:[#allocation8 + $0x290] sm:$0xff]
        %v889 = vld [vmem:[#allocation8 + $0x298] sm:$0xff]
        %v890 = vld [vmem:[#allocation8 + $0x2a0] sm:$0xff]
        %v891 = vld [vmem:[#allocation8 + $0x2a8] sm:$0xff]
        %v892 = vld [vmem:[#allocation8 + $0x2b0] sm:$0xff]
        %v893 = vld [vmem:[#allocation8 + $0x2b8] sm:$0xff]
        %v894 = vld [vmem:[#allocation8 + $0x2c0] sm:$0xff]
        %v895 = vld [vmem:[#allocation8 + $0x2c8] sm:$0xff]
        %v896 = vld [vmem:[#allocation8 + $0x2d0] sm:$0xff]
        %v897 = vld [vmem:[#allocation8 + $0x2d8] sm:$0xff]
        %v898 = vld [vmem:[#allocation8 + $0x2e0] sm:$0xff]
        %v899 = vld [vmem:[#allocation8 + $0x2e8] sm:$0xff]
        %v900 = vld [vmem:[#allocation8 + $0x2f0] sm:$0xff]
        %v901 = vld [vmem:[#allocation8 + $0x2f8] sm:$0xff]
        %v902 = vld [vmem:[#allocation8 + $0x300] sm:$0xff]
        %v903 = vld [vmem:[#allocation8 + $0x308] sm:$0xff]
        %v904 = vld [vmem:[#allocation8 + $0x310] sm:$0xff]
        %v905 = vld [vmem:[#allocation8 + $0x318] sm:$0xff]
        %v906 = vld [vmem:[#allocation8 + $0x320] sm:$0xff]
        %v907 = vld [vmem:[#allocation8 + $0x328] sm:$0xff]
        %v908 = vld [vmem:[#allocation8 + $0x330] sm:$0xff]
        %v909 = vld [vmem:[#allocation8 + $0x338] sm:$0xff]
        %v910 = vld [vmem:[#allocation8 + $0x340] sm:$0xff]
        %v911 = vld [vmem:[#allocation8 + $0x348] sm:$0xff]
        %v912 = vld [vmem:[#allocation8 + $0x350] sm:$0xff]
        %v913 = vld [vmem:[#allocation8 + $0x358] sm:$0xff]
        %v914 = vld [vmem:[#allocation8 + $0x360] sm:$0xff]
        %v915 = vld [vmem:[#allocation8 + $0x368] sm:$0xff]
        %v916 = vld [vmem:[#allocation8 + $0x370] sm:$0xff]
        %v917 = vld [vmem:[#allocation8 + $0x378] sm:$0xff]
        %v918 = vld [vmem:[#allocation8 + $0x380] sm:$0xff]
        %v919 = vld [vmem:[#allocation8 + $0x388] sm:$0xff]
        %v920 = vld [vmem:[#allocation8 + $0x390] sm:$0xff]
        %v921 = vld [vmem:[#allocation8 + $0x398] sm:$0xff]
        %v922 = vld [vmem:[#allocation8 + $0x3a0] sm:$0xff]
        %v923 = vld [vmem:[#allocation8 + $0x3a8] sm:$0xff]
        %v924 = vld [vmem:[#allocation8 + $0x3b0] sm:$0xff]
        %v925 = vld [vmem:[#allocation8 + $0x3b8] sm:$0xff]
        %v926 = vld [vmem:[#allocation8 + $0x3c0] sm:$0xff]
        %v927 = vld [vmem:[#allocation8 + $0x3c8] sm:$0xff]
        %v928 = vld [vmem:[#allocation8 + $0x3d0] sm:$0xff]
        %v929 = vld [vmem:[#allocation8 + $0x3d8] sm:$0xff]
        %v930 = vld [vmem:[#allocation8 + $0x3e0] sm:$0xff]
        %v931 = vld [vmem:[#allocation8 + $0x3e8] sm:$0xff]
        %v932 = vld [vmem:[#allocation8 + $0x3f0] sm:$0xff]
        %v933 = vld [vmem:[#allocation8 + $0x3f8] sm:$0xff]
        %v934 = vld [vmem:[#allocation10] sm:$0x3]
        %v936 = vlaneseq
        %v937 = vshrl.u32 %v936, 7
        %v938 = vsub.s32 0, %v937
        %v939 = vrot.slane %v934, %v938
        %v940 = vlaneseq
        %v941 = vshrl.u32 %v940, 7
        %v942 = vsub.s32 1, %v941
        %v943 = vrot.slane %v934, %v942
        %946 = vmatprep.subr.mxu0 %v807
        %947 = vmatpush1.msra.mxu0 %v806
        %948 = vmatprep.subr.mxu0 %v809
        %949 = vmatpush1.msra.mxu0 %v808
        %950 = vmatprep.subr.mxu0 %v811
        %951 = vmatpush1.msra.mxu0 %v810
        %952 = vmatprep.subr.mxu0 %v813
        %953 = vmatpush1.msra.mxu0 %v812
        %954 = vmatprep.subr.mxu0 %v815
        %955 = vmatpush1.msra.mxu0 %v814
        %956 = vmatprep.subr.mxu0 %v817
        %957 = vmatpush1.msra.mxu0 %v816
        %958 = vmatprep.subr.mxu0 %v819
        %959 = vmatpush1.msra.mxu0 %v818
        %960 = vmatprep.subr.mxu0 %v821
        %961 = vmatpush1.msra.mxu0 %v820
        %962 = vmatprep.subr.mxu0 %v823
        %963 = vmatpush1.msra.mxu0 %v822
        %964 = vmatprep.subr.mxu0 %v825
        %965 = vmatpush1.msra.mxu0 %v824
        %966 = vmatprep.subr.mxu0 %v827
        %967 = vmatpush1.msra.mxu0 %v826
        %968 = vmatprep.subr.mxu0 %v829
        %969 = vmatpush1.msra.mxu0 %v828
        %970 = vmatprep.subr.mxu0 %v831
        %971 = vmatpush1.msra.mxu0 %v830
        %972 = vmatprep.subr.mxu0 %v833
        %973 = vmatpush1.msra.mxu0 %v832
        %974 = vmatprep.subr.mxu0 %v835
        %975 = vmatpush1.msra.mxu0 %v834
        %976 = vmatprep.subr.mxu0 %v837
        %977 = vmatpush1.msra.mxu0 %v836
        %978 = vmatprep.subr.mxu0 %v839
        %979 = vmatpush1.msra.mxu0 %v838
        %980 = vmatprep.subr.mxu0 %v841
        %981 = vmatpush1.msra.mxu0 %v840
        %982 = vmatprep.subr.mxu0 %v843
        %983 = vmatpush1.msra.mxu0 %v842
        %984 = vmatprep.subr.mxu0 %v845
        %985 = vmatpush1.msra.mxu0 %v844
        %986 = vmatprep.subr.mxu0 %v847
        %987 = vmatpush1.msra.mxu0 %v846
        %988 = vmatprep.subr.mxu0 %v849
        %989 = vmatpush1.msra.mxu0 %v848
        %990 = vmatprep.subr.mxu0 %v851
        %991 = vmatpush1.msra.mxu0 %v850
        %992 = vmatprep.subr.mxu0 %v853
        %993 = vmatpush1.msra.mxu0 %v852
        %994 = vmatprep.subr.mxu0 %v855
        %995 = vmatpush1.msra.mxu0 %v854
        %996 = vmatprep.subr.mxu0 %v857
        %997 = vmatpush1.msra.mxu0 %v856
        %998 = vmatprep.subr.mxu0 %v859
        %999 = vmatpush1.msra.mxu0 %v858
        %1000 = vmatprep.subr.mxu0 %v861
        %1001 = vmatpush1.msra.mxu0 %v860
        %1002 = vmatprep.subr.mxu0 %v863
        %1003 = vmatpush1.msra.mxu0 %v862
        %1004 = vmatprep.subr.mxu0 %v865
        %1005 = vmatpush1.msra.mxu0 %v864
        %1006 = vmatprep.subr.mxu0 %v867
        %1007 = vmatpush1.msra.mxu0 %v866
        %1008 = vmatprep.subr.mxu0 %v869
        %1009 = vmatpush1.msra.mxu0 %v868
        %1010 = vmatprep.mubr.f32.mxu0 %v799
        %1011 = vmatmul.mubr.f32.gmra.mrb[0].mxu0 %v798
        %v1012 = vpop.f32.mrb[0].mxu0
        %v1013 = vadd.f32 %v939, %v1012
        %v1014 = vpop.f32.mrb[0].mxu0
        %v1015 = vadd.f32 %v943, %v1014
        %1016 = vmatprep.mubr.f32.mxu0 %v803
        %1017 = vmatmul.mubr.f32.gmra.mrb[0].mxu0 %v802
        %v1018 = vpop.f32.mrb[0].mxu0
        %v1019 = vadd.f32 %v939, %v1018
        %v1020 = vpop.f32.mrb[0].mxu0
        %v1021 = vadd.f32 %v943, %v1020
        %1022 = vdwg.mxu0
        %1023 = vmatprep.subr.mxu0 %v871
        %1024 = vmatpush1.msra.mxu0 %v870
        %1025 = vmatprep.subr.mxu0 %v873
        %1026 = vmatpush1.msra.mxu0 %v872
        %1027 = vmatprep.subr.mxu0 %v875
        %1028 = vmatpush1.msra.mxu0 %v874
        %1029 = vmatprep.subr.mxu0 %v877
        %1030 = vmatpush1.msra.mxu0 %v876
        %1031 = vmatprep.subr.mxu0 %v879
        %1032 = vmatpush1.msra.mxu0 %v878
        %1033 = vmatprep.subr.mxu0 %v881
        %1034 = vmatpush1.msra.mxu0 %v880
        %1035 = vmatprep.subr.mxu0 %v883
        %1036 = vmatpush1.msra.mxu0 %v882
        %1037 = vmatprep.subr.mxu0 %v885
        %1038 = vmatpush1.msra.mxu0 %v884
        %1039 = vmatprep.subr.mxu0 %v887
        %1040 = vmatpush1.msra.mxu0 %v886
        %1041 = vmatprep.subr.mxu0 %v889
        %1042 = vmatpush1.msra.mxu0 %v888
        %1043 = vmatprep.subr.mxu0 %v891
        %1044 = vmatpush1.msra.mxu0 %v890
        %1045 = vmatprep.subr.mxu0 %v893
        %1046 = vmatpush1.msra.mxu0 %v892
        %1047 = vmatprep.subr.mxu0 %v895
        %1048 = vmatpush1.msra.mxu0 %v894
        %1049 = vmatprep.subr.mxu0 %v897
        %1050 = vmatpush1.msra.mxu0 %v896
        %1051 = vmatprep.subr.mxu0 %v899
        %1052 = vmatpush1.msra.mxu0 %v898
        %1053 = vmatprep.subr.mxu0 %v901
        %1054 = vmatpush1.msra.mxu0 %v900
        %1055 = vmatprep.subr.mxu0 %v903
        %1056 = vmatpush1.msra.mxu0 %v902
        %1057 = vmatprep.subr.mxu0 %v905
        %1058 = vmatpush1.msra.mxu0 %v904
        %1059 = vmatprep.subr.mxu0 %v907
        %1060 = vmatpush1.msra.mxu0 %v906
        %1061 = vmatprep.subr.mxu0 %v909
        %1062 = vmatpush1.msra.mxu0 %v908
        %1063 = vmatprep.subr.mxu0 %v911
        %1064 = vmatpush1.msra.mxu0 %v910
        %1065 = vmatprep.subr.mxu0 %v913
        %1066 = vmatpush1.msra.mxu0 %v912
        %1067 = vmatprep.subr.mxu0 %v915
        %1068 = vmatpush1.msra.mxu0 %v914
        %1069 = vmatprep.subr.mxu0 %v917
        %1070 = vmatpush1.msra.mxu0 %v916
        %1071 = vmatprep.subr.mxu0 %v919
        %1072 = vmatpush1.msra.mxu0 %v918
        %1073 = vmatprep.subr.mxu0 %v921
        %1074 = vmatpush1.msra.mxu0 %v920
        %1075 = vmatprep.subr.mxu0 %v923
        %1076 = vmatpush1.msra.mxu0 %v922
        %1077 = vmatprep.subr.mxu0 %v925
        %1078 = vmatpush1.msra.mxu0 %v924
        %1079 = vmatprep.subr.mxu0 %v927
        %1080 = vmatpush1.msra.mxu0 %v926
        %1081 = vmatprep.subr.mxu0 %v929
        %1082 = vmatpush1.msra.mxu0 %v928
        %1083 = vmatprep.subr.mxu0 %v931
        %1084 = vmatpush1.msra.mxu0 %v930
        %1085 = vmatprep.subr.mxu0 %v933
        %1086 = vmatpush1.msra.mxu0 %v932
        %1087 = vmatprep.mubr.f32.mxu0 %v801
        %1088 = vmatmul.mubr.f32.gmra.mrb[0].mxu0 %v800
        %v1089 = vpop.f32.mrb[0].mxu0
        %v1090 = vadd.f32 %v1013, %v1089
        %v1091 = vpop.f32.mrb[0].mxu0
        %v1092 = vadd.f32 %v1015, %v1091
        %1093 = vmatprep.mubr.f32.mxu0 %v805
        %1094 = vmatmul.mubr.f32.gmra.mrb[0].mxu0 %v804
        %v1095 = vpop.f32.mrb[0].mxu0
        %v1096 = vadd.f32 %v1019, %v1095
        %v1097 = vpop.f32.mrb[0].mxu0
        %v1098 = vadd.f32 %v1021, %v1097
        %1099 = vdwg.mxu0
        %v1100 = vmax.f32 %v1090, 0.0
        %v1101 = vmax.f32 %v1092, 0.0
        %v1102 = vmax.f32 %v1096, 0.0
        %v1103 = vmax.f32 %v1098, 0.0
        %v1104 = vld [vmem:[#allocation11] sm:$0xff]
        %v1105 = vld [vmem:[#allocation11 + $0x8] sm:$0xff]
        %v1106 = vld [vmem:[#allocation11 + $0x10] sm:$0xff]
        %v1107 = vld [vmem:[#allocation11 + $0x18] sm:$0xff]
        %v1108 = vld [vmem:[#allocation11 + $0x20] sm:$0xff]
        %v1109 = vld [vmem:[#allocation11 + $0x28] sm:$0xff]
        %v1110 = vld [vmem:[#allocation11 + $0x30] sm:$0xff]
        %v1111 = vld [vmem:[#allocation11 + $0x38] sm:$0xff]
        %v1112 = vld [vmem:[#allocation11 + $0x40] sm:$0xff]
        %v1113 = vld [vmem:[#allocation11 + $0x48] sm:$0xff]
        %v1114 = vld [vmem:[#allocation11 + $0x50] sm:$0xff]
        %v1115 = vld [vmem:[#allocation11 + $0x58] sm:$0xff]
        %v1116 = vld [vmem:[#allocation11 + $0x60] sm:$0xff]
        %v1117 = vld [vmem:[#allocation11 + $0x68] sm:$0xff]
        %v1118 = vld [vmem:[#allocation11 + $0x70] sm:$0xff]
        %v1119 = vld [vmem:[#allocation11 + $0x78] sm:$0xff]
        %v1120 = vld [vmem:[#allocation11 + $0x80] sm:$0xff]
        %v1121 = vld [vmem:[#allocation11 + $0x88] sm:$0xff]
        %v1122 = vld [vmem:[#allocation11 + $0x90] sm:$0xff]
        %v1123 = vld [vmem:[#allocation11 + $0x98] sm:$0xff]
        %v1124 = vld [vmem:[#allocation11 + $0xa0] sm:$0xff]
        %v1125 = vld [vmem:[#allocation11 + $0xa8] sm:$0xff]
        %v1126 = vld [vmem:[#allocation11 + $0xb0] sm:$0xff]
        %v1127 = vld [vmem:[#allocation11 + $0xb8] sm:$0xff]
        %v1128 = vld [vmem:[#allocation11 + $0xc0] sm:$0xff]
        %v1129 = vld [vmem:[#allocation11 + $0xc8] sm:$0xff]
        %v1130 = vld [vmem:[#allocation11 + $0xd0] sm:$0xff]
        %v1131 = vld [vmem:[#allocation11 + $0xd8] sm:$0xff]
        %v1132 = vld [vmem:[#allocation11 + $0xe0] sm:$0xff]
        %v1133 = vld [vmem:[#allocation11 + $0xe8] sm:$0xff]
        %v1134 = vld [vmem:[#allocation11 + $0xf0] sm:$0xff]
        %v1135 = vld [vmem:[#allocation11 + $0xf8] sm:$0xff]
        %v1136 = vld [vmem:[#allocation11 + $0x100] sm:$0xff]
        %v1137 = vld [vmem:[#allocation11 + $0x108] sm:$0xff]
        %v1138 = vld [vmem:[#allocation11 + $0x110] sm:$0xff]
        %v1139 = vld [vmem:[#allocation11 + $0x118] sm:$0xff]
        %v1140 = vld [vmem:[#allocation11 + $0x120] sm:$0xff]
        %v1141 = vld [vmem:[#allocation11 + $0x128] sm:$0xff]
        %v1142 = vld [vmem:[#allocation11 + $0x130] sm:$0xff]
        %v1143 = vld [vmem:[#allocation11 + $0x138] sm:$0xff]
        %v1144 = vld [vmem:[#allocation11 + $0x140] sm:$0xff]
        %v1145 = vld [vmem:[#allocation11 + $0x148] sm:$0xff]
        %v1146 = vld [vmem:[#allocation11 + $0x150] sm:$0xff]
        %v1147 = vld [vmem:[#allocation11 + $0x158] sm:$0xff]
        %v1148 = vld [vmem:[#allocation11 + $0x160] sm:$0xff]
        %v1149 = vld [vmem:[#allocation11 + $0x168] sm:$0xff]
        %v1150 = vld [vmem:[#allocation11 + $0x170] sm:$0xff]
        %v1151 = vld [vmem:[#allocation11 + $0x178] sm:$0xff]
        %v1152 = vld [vmem:[#allocation11 + $0x180] sm:$0xff]
        %v1153 = vld [vmem:[#allocation11 + $0x188] sm:$0xff]
        %v1154 = vld [vmem:[#allocation11 + $0x190] sm:$0xff]
        %v1155 = vld [vmem:[#allocation11 + $0x198] sm:$0xff]
        %v1156 = vld [vmem:[#allocation11 + $0x1a0] sm:$0xff]
        %v1157 = vld [vmem:[#allocation11 + $0x1a8] sm:$0xff]
        %v1158 = vld [vmem:[#allocation11 + $0x1b0] sm:$0xff]
        %v1159 = vld [vmem:[#allocation11 + $0x1b8] sm:$0xff]
        %v1160 = vld [vmem:[#allocation11 + $0x1c0] sm:$0xff]
        %v1161 = vld [vmem:[#allocation11 + $0x1c8] sm:$0xff]
        %v1162 = vld [vmem:[#allocation11 + $0x1d0] sm:$0xff]
        %v1163 = vld [vmem:[#allocation11 + $0x1d8] sm:$0xff]
        %v1164 = vld [vmem:[#allocation11 + $0x1e0] sm:$0xff]
        %v1165 = vld [vmem:[#allocation11 + $0x1e8] sm:$0xff]
        %v1166 = vld [vmem:[#allocation11 + $0x1f0] sm:$0xff]
        %v1167 = vld [vmem:[#allocation11 + $0x1f8] sm:$0xff]
        %v1168 = vld [vmem:[#allocation13] sm:$0x3]
        %v1170 = vlaneseq
        %v1171 = vshrl.u32 %v1170, 7
        %v1172 = vsub.s32 0, %v1171
        %v1173 = vrot.slane %v1168, %v1172
        %v1174 = vlaneseq
        %v1175 = vshrl.u32 %v1174, 7
        %v1176 = vsub.s32 1, %v1175
        %v1177 = vrot.slane %v1168, %v1176
        %1180 = vmatprep.subr.mxu0 %v1105
        %1181 = vmatpush1.msra.mxu0 %v1104
        %1182 = vmatprep.subr.mxu0 %v1107
        %1183 = vmatpush1.msra.mxu0 %v1106
        %1184 = vmatprep.subr.mxu0 %v1109
        %1185 = vmatpush1.msra.mxu0 %v1108
        %1186 = vmatprep.subr.mxu0 %v1111
        %1187 = vmatpush1.msra.mxu0 %v1110
        %1188 = vmatprep.subr.mxu0 %v1113
        %1189 = vmatpush1.msra.mxu0 %v1112
        %1190 = vmatprep.subr.mxu0 %v1115
        %1191 = vmatpush1.msra.mxu0 %v1114
        %1192 = vmatprep.subr.mxu0 %v1117
        %1193 = vmatpush1.msra.mxu0 %v1116
        %1194 = vmatprep.subr.mxu0 %v1119
        %1195 = vmatpush1.msra.mxu0 %v1118
        %1196 = vmatprep.subr.mxu0 %v1121
        %1197 = vmatpush1.msra.mxu0 %v1120
        %1198 = vmatprep.subr.mxu0 %v1123
        %1199 = vmatpush1.msra.mxu0 %v1122
        %1200 = vmatprep.subr.mxu0 %v1125
        %1201 = vmatpush1.msra.mxu0 %v1124
        %1202 = vmatprep.subr.mxu0 %v1127
        %1203 = vmatpush1.msra.mxu0 %v1126
        %1204 = vmatprep.subr.mxu0 %v1129
        %1205 = vmatpush1.msra.mxu0 %v1128
        %1206 = vmatprep.subr.mxu0 %v1131
        %1207 = vmatpush1.msra.mxu0 %v1130
        %1208 = vmatprep.subr.mxu0 %v1133
        %1209 = vmatpush1.msra.mxu0 %v1132
        %1210 = vmatprep.subr.mxu0 %v1135
        %1211 = vmatpush1.msra.mxu0 %v1134
        %1212 = vmatprep.subr.mxu0 %v1137
        %1213 = vmatpush1.msra.mxu0 %v1136
        %1214 = vmatprep.subr.mxu0 %v1139
        %1215 = vmatpush1.msra.mxu0 %v1138
        %1216 = vmatprep.subr.mxu0 %v1141
        %1217 = vmatpush1.msra.mxu0 %v1140
        %1218 = vmatprep.subr.mxu0 %v1143
        %1219 = vmatpush1.msra.mxu0 %v1142
        %1220 = vmatprep.subr.mxu0 %v1145
        %1221 = vmatpush1.msra.mxu0 %v1144
        %1222 = vmatprep.subr.mxu0 %v1147
        %1223 = vmatpush1.msra.mxu0 %v1146
        %1224 = vmatprep.subr.mxu0 %v1149
        %1225 = vmatpush1.msra.mxu0 %v1148
        %1226 = vmatprep.subr.mxu0 %v1151
        %1227 = vmatpush1.msra.mxu0 %v1150
        %1228 = vmatprep.subr.mxu0 %v1153
        %1229 = vmatpush1.msra.mxu0 %v1152
        %1230 = vmatprep.subr.mxu0 %v1155
        %1231 = vmatpush1.msra.mxu0 %v1154
        %1232 = vmatprep.subr.mxu0 %v1157
        %1233 = vmatpush1.msra.mxu0 %v1156
        %1234 = vmatprep.subr.mxu0 %v1159
        %1235 = vmatpush1.msra.mxu0 %v1158
        %1236 = vmatprep.subr.mxu0 %v1161
        %1237 = vmatpush1.msra.mxu0 %v1160
        %1238 = vmatprep.subr.mxu0 %v1163
        %1239 = vmatpush1.msra.mxu0 %v1162
        %1240 = vmatprep.subr.mxu0 %v1165
        %1241 = vmatpush1.msra.mxu0 %v1164
        %1242 = vmatprep.subr.mxu0 %v1167
        %1243 = vmatpush1.msra.mxu0 %v1166
        %1244 = vmatprep.mubr.f32.mxu0 %v1101
        %1245 = vmatmul.mubr.f32.gmra.mrb[0].mxu0 %v1100
        %v1246 = vpop.f32.mrb[0].mxu0
        %v1247 = vadd.f32 %v1173, %v1246
        %v1248 = vpop.f32.mrb[0].mxu0
        %v1249 = vadd.f32 %v1177, %v1248
        %1250 = vmatprep.mubr.f32.mxu0 %v1103
        %1251 = vmatmul.mubr.f32.gmra.mrb[0].mxu0 %v1102
        %v1252 = vpop.f32.mrb[0].mxu0
        %v1253 = vadd.f32 %v1173, %v1252
        %v1254 = vpop.f32.mrb[0].mxu0
        %v1255 = vadd.f32 %v1177, %v1254
        %1256 = vdwg.mxu0
        %v1257 = vmax.f32 %v1247, 0.0
        %v1258 = vmax.f32 %v1249, 0.0
        %v1259 = vmax.f32 %v1253, 0.0
        %v1260 = vmax.f32 %v1255, 0.0
        %v1261 = vld [vmem:[#allocation14] sm:$0xff]
        %v1262 = vld [vmem:[#allocation14 + $0x8] sm:$0xff]
        %v1263 = vld [vmem:[#allocation14 + $0x10] sm:$0xff]
        %v1264 = vld [vmem:[#allocation14 + $0x18] sm:$0xff]
        %v1265 = vld [vmem:[#allocation14 + $0x20] sm:$0xff]
        %v1266 = vld [vmem:[#allocation14 + $0x28] sm:$0xff]
        %v1267 = vld [vmem:[#allocation14 + $0x30] sm:$0xff]
        %v1268 = vld [vmem:[#allocation14 + $0x38] sm:$0xff]
        %v1269 = vld [vmem:[#allocation14 + $0x40] sm:$0xff]
        %v1270 = vld [vmem:[#allocation14 + $0x48] sm:$0xff]
        %v1271 = vld [vmem:[#allocation14 + $0x50] sm:$0xff]
        %v1272 = vld [vmem:[#allocation14 + $0x58] sm:$0xff]
        %v1273 = vld [vmem:[#allocation14 + $0x60] sm:$0xff]
        %v1274 = vld [vmem:[#allocation14 + $0x68] sm:$0xff]
        %v1275 = vld [vmem:[#allocation14 + $0x70] sm:$0xff]
        %v1276 = vld [vmem:[#allocation14 + $0x78] sm:$0xff]
        %v1277 = vld [vmem:[#allocation14 + $0x80] sm:$0xff]
        %v1278 = vld [vmem:[#allocation14 + $0x88] sm:$0xff]
        %v1279 = vld [vmem:[#allocation14 + $0x90] sm:$0xff]
        %v1280 = vld [vmem:[#allocation14 + $0x98] sm:$0xff]
        %v1281 = vld [vmem:[#allocation14 + $0xa0] sm:$0xff]
        %v1282 = vld [vmem:[#allocation14 + $0xa8] sm:$0xff]
        %v1283 = vld [vmem:[#allocation14 + $0xb0] sm:$0xff]
        %v1284 = vld [vmem:[#allocation14 + $0xb8] sm:$0xff]
        %v1285 = vld [vmem:[#allocation14 + $0xc0] sm:$0xff]
        %v1286 = vld [vmem:[#allocation14 + $0xc8] sm:$0xff]
        %v1287 = vld [vmem:[#allocation14 + $0xd0] sm:$0xff]
        %v1288 = vld [vmem:[#allocation14 + $0xd8] sm:$0xff]
        %v1289 = vld [vmem:[#allocation14 + $0xe0] sm:$0xff]
        %v1290 = vld [vmem:[#allocation14 + $0xe8] sm:$0xff]
        %v1291 = vld [vmem:[#allocation14 + $0xf0] sm:$0xff]
        %v1292 = vld [vmem:[#allocation14 + $0xf8] sm:$0xff]
        %v1293 = vld [vmem:[#allocation14 + $0x100] sm:$0xff]
        %v1294 = vld [vmem:[#allocation14 + $0x108] sm:$0xff]
        %v1295 = vld [vmem:[#allocation14 + $0x110] sm:$0xff]
        %v1296 = vld [vmem:[#allocation14 + $0x118] sm:$0xff]
        %v1297 = vld [vmem:[#allocation14 + $0x120] sm:$0xff]
        %v1298 = vld [vmem:[#allocation14 + $0x128] sm:$0xff]
        %v1299 = vld [vmem:[#allocation14 + $0x130] sm:$0xff]
        %v1300 = vld [vmem:[#allocation14 + $0x138] sm:$0xff]
        %v1301 = vld [vmem:[#allocation14 + $0x140] sm:$0xff]
        %v1302 = vld [vmem:[#allocation14 + $0x148] sm:$0xff]
        %v1303 = vld [vmem:[#allocation14 + $0x150] sm:$0xff]
        %v1304 = vld [vmem:[#allocation14 + $0x158] sm:$0xff]
        %v1305 = vld [vmem:[#allocation14 + $0x160] sm:$0xff]
        %v1306 = vld [vmem:[#allocation14 + $0x168] sm:$0xff]
        %v1307 = vld [vmem:[#allocation14 + $0x170] sm:$0xff]
        %v1308 = vld [vmem:[#allocation14 + $0x178] sm:$0xff]
        %v1309 = vld [vmem:[#allocation14 + $0x180] sm:$0xff]
        %v1310 = vld [vmem:[#allocation14 + $0x188] sm:$0xff]
        %v1311 = vld [vmem:[#allocation14 + $0x190] sm:$0xff]
        %v1312 = vld [vmem:[#allocation14 + $0x198] sm:$0xff]
        %v1313 = vld [vmem:[#allocation14 + $0x1a0] sm:$0xff]
        %v1314 = vld [vmem:[#allocation14 + $0x1a8] sm:$0xff]
        %v1315 = vld [vmem:[#allocation14 + $0x1b0] sm:$0xff]
        %v1316 = vld [vmem:[#allocation14 + $0x1b8] sm:$0xff]
        %v1317 = vld [vmem:[#allocation14 + $0x1c0] sm:$0xff]
        %v1318 = vld [vmem:[#allocation14 + $0x1c8] sm:$0xff]
        %v1319 = vld [vmem:[#allocation14 + $0x1d0] sm:$0xff]
        %v1320 = vld [vmem:[#allocation14 + $0x1d8] sm:$0xff]
        %v1321 = vld [vmem:[#allocation14 + $0x1e0] sm:$0xff]
        %v1322 = vld [vmem:[#allocation14 + $0x1e8] sm:$0xff]
        %v1323 = vld [vmem:[#allocation14 + $0x1f0] sm:$0xff]
        %v1324 = vld [vmem:[#allocation14 + $0x1f8] sm:$0xff]
        %v1325 = vld [vmem:[#allocation14 + $0x200] sm:$0xff]
        %v1326 = vld [vmem:[#allocation14 + $0x208] sm:$0xff]
        %v1327 = vld [vmem:[#allocation14 + $0x210] sm:$0xff]
        %v1328 = vld [vmem:[#allocation14 + $0x218] sm:$0xff]
        %v1329 = vld [vmem:[#allocation14 + $0x220] sm:$0xff]
        %v1330 = vld [vmem:[#allocation14 + $0x228] sm:$0xff]
        %v1331 = vld [vmem:[#allocation14 + $0x230] sm:$0xff]
        %v1332 = vld [vmem:[#allocation14 + $0x238] sm:$0xff]
        %v1333 = vld [vmem:[#allocation14 + $0x240] sm:$0xff]
        %v1334 = vld [vmem:[#allocation14 + $0x248] sm:$0xff]
        %v1335 = vld [vmem:[#allocation14 + $0x250] sm:$0xff]
        %v1336 = vld [vmem:[#allocation14 + $0x258] sm:$0xff]
        %v1337 = vld [vmem:[#allocation14 + $0x260] sm:$0xff]
        %v1338 = vld [vmem:[#allocation14 + $0x268] sm:$0xff]
        %v1339 = vld [vmem:[#allocation14 + $0x270] sm:$0xff]
        %v1340 = vld [vmem:[#allocation14 + $0x278] sm:$0xff]
        %v1341 = vld [vmem:[#allocation14 + $0x280] sm:$0xff]
        %v1342 = vld [vmem:[#allocation14 + $0x288] sm:$0xff]
        %v1343 = vld [vmem:[#allocation14 + $0x290] sm:$0xff]
        %v1344 = vld [vmem:[#allocation14 + $0x298] sm:$0xff]
        %v1345 = vld [vmem:[#allocation14 + $0x2a0] sm:$0xff]
        %v1346 = vld [vmem:[#allocation14 + $0x2a8] sm:$0xff]
        %v1347 = vld [vmem:[#allocation14 + $0x2b0] sm:$0xff]
        %v1348 = vld [vmem:[#allocation14 + $0x2b8] sm:$0xff]
        %v1349 = vld [vmem:[#allocation14 + $0x2c0] sm:$0xff]
        %v1350 = vld [vmem:[#allocation14 + $0x2c8] sm:$0xff]
        %v1351 = vld [vmem:[#allocation14 + $0x2d0] sm:$0xff]
        %v1352 = vld [vmem:[#allocation14 + $0x2d8] sm:$0xff]
        %v1353 = vld [vmem:[#allocation14 + $0x2e0] sm:$0xff]
        %v1354 = vld [vmem:[#allocation14 + $0x2e8] sm:$0xff]
        %v1355 = vld [vmem:[#allocation14 + $0x2f0] sm:$0xff]
        %v1356 = vld [vmem:[#allocation14 + $0x2f8] sm:$0xff]
        %v1357 = vld [vmem:[#allocation14 + $0x300] sm:$0xff]
        %v1358 = vld [vmem:[#allocation14 + $0x308] sm:$0xff]
        %v1359 = vld [vmem:[#allocation14 + $0x310] sm:$0xff]
        %v1360 = vld [vmem:[#allocation14 + $0x318] sm:$0xff]
        %v1361 = vld [vmem:[#allocation14 + $0x320] sm:$0xff]
        %v1362 = vld [vmem:[#allocation14 + $0x328] sm:$0xff]
        %v1363 = vld [vmem:[#allocation14 + $0x330] sm:$0xff]
        %v1364 = vld [vmem:[#allocation14 + $0x338] sm:$0xff]
        %v1365 = vld [vmem:[#allocation14 + $0x340] sm:$0xff]
        %v1366 = vld [vmem:[#allocation14 + $0x348] sm:$0xff]
        %v1367 = vld [vmem:[#allocation14 + $0x350] sm:$0xff]
        %v1368 = vld [vmem:[#allocation14 + $0x358] sm:$0xff]
        %v1369 = vld [vmem:[#allocation14 + $0x360] sm:$0xff]
        %v1370 = vld [vmem:[#allocation14 + $0x368] sm:$0xff]
        %v1371 = vld [vmem:[#allocation14 + $0x370] sm:$0xff]
        %v1372 = vld [vmem:[#allocation14 + $0x378] sm:$0xff]
        %v1373 = vld [vmem:[#allocation14 + $0x380] sm:$0xff]
        %v1374 = vld [vmem:[#allocation14 + $0x388] sm:$0xff]
        %v1375 = vld [vmem:[#allocation14 + $0x390] sm:$0xff]
        %v1376 = vld [vmem:[#allocation14 + $0x398] sm:$0xff]
        %v1377 = vld [vmem:[#allocation14 + $0x3a0] sm:$0xff]
        %v1378 = vld [vmem:[#allocation14 + $0x3a8] sm:$0xff]
        %v1379 = vld [vmem:[#allocation14 + $0x3b0] sm:$0xff]
        %v1380 = vld [vmem:[#allocation14 + $0x3b8] sm:$0xff]
        %v1381 = vld [vmem:[#allocation14 + $0x3c0] sm:$0xff]
        %v1382 = vld [vmem:[#allocation14 + $0x3c8] sm:$0xff]
        %v1383 = vld [vmem:[#allocation14 + $0x3d0] sm:$0xff]
        %v1384 = vld [vmem:[#allocation14 + $0x3d8] sm:$0xff]
        %v1385 = vld [vmem:[#allocation14 + $0x3e0] sm:$0xff]
        %v1386 = vld [vmem:[#allocation14 + $0x3e8] sm:$0xff]
        %v1387 = vld [vmem:[#allocation14 + $0x3f0] sm:$0xff]
        %v1388 = vld [vmem:[#allocation14 + $0x3f8] sm:$0xff]
        %v1389 = vld [vmem:[#allocation16] sm:$0xf]
        %v1391 = vlaneseq
        %v1392 = vshrl.u32 %v1391, 7
        %v1393 = vsub.s32 0, %v1392
        %v1394 = vrot.slane %v1389, %v1393
        %v1395 = vlaneseq
        %v1396 = vshrl.u32 %v1395, 7
        %v1397 = vsub.s32 1, %v1396
        %v1398 = vrot.slane %v1389, %v1397
        %v1399 = vlaneseq
        %v1400 = vshrl.u32 %v1399, 7
        %v1401 = vsub.s32 2, %v1400
        %v1402 = vrot.slane %v1389, %v1401
        %v1403 = vlaneseq
        %v1404 = vshrl.u32 %v1403, 7
        %v1405 = vsub.s32 3, %v1404
        %v1406 = vrot.slane %v1389, %v1405
        %1411 = vmatprep.subr.mxu0 %v1262
        %1412 = vmatpush1.msra.mxu0 %v1261
        %1413 = vmatprep.subr.mxu0 %v1266
        %1414 = vmatpush1.msra.mxu0 %v1265
        %1415 = vmatprep.subr.mxu0 %v1270
        %1416 = vmatpush1.msra.mxu0 %v1269
        %1417 = vmatprep.subr.mxu0 %v1274
        %1418 = vmatpush1.msra.mxu0 %v1273
        %1419 = vmatprep.subr.mxu0 %v1278
        %1420 = vmatpush1.msra.mxu0 %v1277
        %1421 = vmatprep.subr.mxu0 %v1282
        %1422 = vmatpush1.msra.mxu0 %v1281
        %1423 = vmatprep.subr.mxu0 %v1286
        %1424 = vmatpush1.msra.mxu0 %v1285
        %1425 = vmatprep.subr.mxu0 %v1290
        %1426 = vmatpush1.msra.mxu0 %v1289
        %1427 = vmatprep.subr.mxu0 %v1294
        %1428 = vmatpush1.msra.mxu0 %v1293
        %1429 = vmatprep.subr.mxu0 %v1298
        %1430 = vmatpush1.msra.mxu0 %v1297
        %1431 = vmatprep.subr.mxu0 %v1302
        %1432 = vmatpush1.msra.mxu0 %v1301
        %1433 = vmatprep.subr.mxu0 %v1306
        %1434 = vmatpush1.msra.mxu0 %v1305
        %1435 = vmatprep.subr.mxu0 %v1310
        %1436 = vmatpush1.msra.mxu0 %v1309
        %1437 = vmatprep.subr.mxu0 %v1314
        %1438 = vmatpush1.msra.mxu0 %v1313
        %1439 = vmatprep.subr.mxu0 %v1318
        %1440 = vmatpush1.msra.mxu0 %v1317
        %1441 = vmatprep.subr.mxu0 %v1322
        %1442 = vmatpush1.msra.mxu0 %v1321
        %1443 = vmatprep.subr.mxu0 %v1326
        %1444 = vmatpush1.msra.mxu0 %v1325
        %1445 = vmatprep.subr.mxu0 %v1330
        %1446 = vmatpush1.msra.mxu0 %v1329
        %1447 = vmatprep.subr.mxu0 %v1334
        %1448 = vmatpush1.msra.mxu0 %v1333
        %1449 = vmatprep.subr.mxu0 %v1338
        %1450 = vmatpush1.msra.mxu0 %v1337
        %1451 = vmatprep.subr.mxu0 %v1342
        %1452 = vmatpush1.msra.mxu0 %v1341
        %1453 = vmatprep.subr.mxu0 %v1346
        %1454 = vmatpush1.msra.mxu0 %v1345
        %1455 = vmatprep.subr.mxu0 %v1350
        %1456 = vmatpush1.msra.mxu0 %v1349
        %1457 = vmatprep.subr.mxu0 %v1354
        %1458 = vmatpush1.msra.mxu0 %v1353
        %1459 = vmatprep.subr.mxu0 %v1358
        %1460 = vmatpush1.msra.mxu0 %v1357
        %1461 = vmatprep.subr.mxu0 %v1362
        %1462 = vmatpush1.msra.mxu0 %v1361
        %1463 = vmatprep.subr.mxu0 %v1366
        %1464 = vmatpush1.msra.mxu0 %v1365
        %1465 = vmatprep.subr.mxu0 %v1370
        %1466 = vmatpush1.msra.mxu0 %v1369
        %1467 = vmatprep.subr.mxu0 %v1374
        %1468 = vmatpush1.msra.mxu0 %v1373
        %1469 = vmatprep.subr.mxu0 %v1378
        %1470 = vmatpush1.msra.mxu0 %v1377
        %1471 = vmatprep.subr.mxu0 %v1382
        %1472 = vmatpush1.msra.mxu0 %v1381
        %1473 = vmatprep.subr.mxu0 %v1386
        %1474 = vmatpush1.msra.mxu0 %v1385
        %1475 = vmatprep.mubr.f32.mxu0 %v1258
        %1476 = vmatmul.mubr.f32.gmra.mrb[0].mxu0 %v1257
        %v1477 = vpop.f32.mrb[0].mxu0
        %v1478 = vadd.f32 %v1394, %v1477
        %v1479 = vpop.f32.mrb[0].mxu0
        %v1480 = vadd.f32 %v1398, %v1479
        %1481 = vmatprep.mubr.f32.mxu0 %v1260
        %1482 = vmatmul.mubr.f32.gmra.mrb[0].mxu0 %v1259
        %v1483 = vpop.f32.mrb[0].mxu0
        %v1484 = vadd.f32 %v1394, %v1483
        %v1485 = vpop.f32.mrb[0].mxu0
        %v1486 = vadd.f32 %v1398, %v1485
        %1487 = vdwg.mxu0
        %1488 = vmatprep.subr.mxu0 %v1264
        %1489 = vmatpush1.msra.mxu0 %v1263
        %1490 = vmatprep.subr.mxu0 %v1268
        %1491 = vmatpush1.msra.mxu0 %v1267
        %1492 = vmatprep.subr.mxu0 %v1272
        %1493 = vmatpush1.msra.mxu0 %v1271
        %1494 = vmatprep.subr.mxu0 %v1276
        %1495 = vmatpush1.msra.mxu0 %v1275
        %1496 = vmatprep.subr.mxu0 %v1280
        %1497 = vmatpush1.msra.mxu0 %v1279
        %1498 = vmatprep.subr.mxu0 %v1284
        %1499 = vmatpush1.msra.mxu0 %v1283
        %1500 = vmatprep.subr.mxu0 %v1288
        %1501 = vmatpush1.msra.mxu0 %v1287
        %1502 = vmatprep.subr.mxu0 %v1292
        %1503 = vmatpush1.msra.mxu0 %v1291
        %1504 = vmatprep.subr.mxu0 %v1296
        %1505 = vmatpush1.msra.mxu0 %v1295
        %1506 = vmatprep.subr.mxu0 %v1300
        %1507 = vmatpush1.msra.mxu0 %v1299
        %1508 = vmatprep.subr.mxu0 %v1304
        %1509 = vmatpush1.msra.mxu0 %v1303
        %1510 = vmatprep.subr.mxu0 %v1308
        %1511 = vmatpush1.msra.mxu0 %v1307
        %1512 = vmatprep.subr.mxu0 %v1312
        %1513 = vmatpush1.msra.mxu0 %v1311
        %1514 = vmatprep.subr.mxu0 %v1316
        %1515 = vmatpush1.msra.mxu0 %v1315
        %1516 = vmatprep.subr.mxu0 %v1320
        %1517 = vmatpush1.msra.mxu0 %v1319
        %1518 = vmatprep.subr.mxu0 %v1324
        %1519 = vmatpush1.msra.mxu0 %v1323
        %1520 = vmatprep.subr.mxu0 %v1328
        %1521 = vmatpush1.msra.mxu0 %v1327
        %1522 = vmatprep.subr.mxu0 %v1332
        %1523 = vmatpush1.msra.mxu0 %v1331
        %1524 = vmatprep.subr.mxu0 %v1336
        %1525 = vmatpush1.msra.mxu0 %v1335
        %1526 = vmatprep.subr.mxu0 %v1340
        %1527 = vmatpush1.msra.mxu0 %v1339
        %1528 = vmatprep.subr.mxu0 %v1344
        %1529 = vmatpush1.msra.mxu0 %v1343
        %1530 = vmatprep.subr.mxu0 %v1348
        %1531 = vmatpush1.msra.mxu0 %v1347
        %1532 = vmatprep.subr.mxu0 %v1352
        %1533 = vmatpush1.msra.mxu0 %v1351
        %1534 = vmatprep.subr.mxu0 %v1356
        %1535 = vmatpush1.msra.mxu0 %v1355
        %1536 = vmatprep.subr.mxu0 %v1360
        %1537 = vmatpush1.msra.mxu0 %v1359
        %1538 = vmatprep.subr.mxu0 %v1364
        %1539 = vmatpush1.msra.mxu0 %v1363
        %1540 = vmatprep.subr.mxu0 %v1368
        %1541 = vmatpush1.msra.mxu0 %v1367
        %1542 = vmatprep.subr.mxu0 %v1372
        %1543 = vmatpush1.msra.mxu0 %v1371
        %1544 = vmatprep.subr.mxu0 %v1376
        %1545 = vmatpush1.msra.mxu0 %v1375
        %1546 = vmatprep.subr.mxu0 %v1380
        %1547 = vmatpush1.msra.mxu0 %v1379
        %1548 = vmatprep.subr.mxu0 %v1384
        %1549 = vmatpush1.msra.mxu0 %v1383
        %1550 = vmatprep.subr.mxu0 %v1388
        %1551 = vmatpush1.msra.mxu0 %v1387
        %1552 = vmatprep.mubr.f32.mxu0 %v1258
        %1553 = vmatmul.mubr.f32.gmra.mrb[0].mxu0 %v1257
        %v1554 = vpop.f32.mrb[0].mxu0
        %v1555 = vadd.f32 %v1402, %v1554
        %v1556 = vpop.f32.mrb[0].mxu0
        %v1557 = vadd.f32 %v1406, %v1556
        %1558 = vmatprep.mubr.f32.mxu0 %v1260
        %1559 = vmatmul.mubr.f32.gmra.mrb[0].mxu0 %v1259
        %v1560 = vpop.f32.mrb[0].mxu0
        %v1561 = vadd.f32 %v1402, %v1560
        %v1562 = vpop.f32.mrb[0].mxu0
        %v1563 = vadd.f32 %v1406, %v1562
        %1564 = vdwg.mxu0
        %v1565 = vmax.f32 %v1478, 0.0
        %v1566 = vmax.f32 %v1480, 0.0
        %v1567 = vmax.f32 %v1555, 0.0
        %v1568 = vmax.f32 %v1557, 0.0
        %v1569 = vmax.f32 %v1484, 0.0
        %v1570 = vmax.f32 %v1486, 0.0
        %v1571 = vmax.f32 %v1561, 0.0
        %v1572 = vmax.f32 %v1563, 0.0
        %v1573 = vld [vmem:[#allocation17] sm:$0xff]
        %v1574 = vld [vmem:[#allocation17 + $0x8] sm:$0xff]
        %v1575 = vld [vmem:[#allocation17 + $0x10] sm:$0xff]
        %v1576 = vld [vmem:[#allocation17 + $0x18] sm:$0xff]
        %v1577 = vld [vmem:[#allocation17 + $0x20] sm:$0xff]
        %v1578 = vld [vmem:[#allocation17 + $0x28] sm:$0xff]
        %v1579 = vld [vmem:[#allocation17 + $0x30] sm:$0xff]
        %v1580 = vld [vmem:[#allocation17 + $0x38] sm:$0xff]
        %v1581 = vld [vmem:[#allocation17 + $0x40] sm:$0xff]
        %v1582 = vld [vmem:[#allocation17 + $0x48] sm:$0xff]
        %v1583 = vld [vmem:[#allocation17 + $0x50] sm:$0xff]
        %v1584 = vld [vmem:[#allocation17 + $0x58] sm:$0xff]
        %v1585 = vld [vmem:[#allocation17 + $0x60] sm:$0xff]
        %v1586 = vld [vmem:[#allocation17 + $0x68] sm:$0xff]
        %v1587 = vld [vmem:[#allocation17 + $0x70] sm:$0xff]
        %v1588 = vld [vmem:[#allocation17 + $0x78] sm:$0xff]
        %v1589 = vld [vmem:[#allocation17 + $0x80] sm:$0xff]
        %v1590 = vld [vmem:[#allocation17 + $0x88] sm:$0xff]
        %v1591 = vld [vmem:[#allocation17 + $0x90] sm:$0xff]
        %v1592 = vld [vmem:[#allocation17 + $0x98] sm:$0xff]
        %v1593 = vld [vmem:[#allocation17 + $0xa0] sm:$0xff]
        %v1594 = vld [vmem:[#allocation17 + $0xa8] sm:$0xff]
        %v1595 = vld [vmem:[#allocation17 + $0xb0] sm:$0xff]
        %v1596 = vld [vmem:[#allocation17 + $0xb8] sm:$0xff]
        %v1597 = vld [vmem:[#allocation17 + $0xc0] sm:$0xff]
        %v1598 = vld [vmem:[#allocation17 + $0xc8] sm:$0xff]
        %v1599 = vld [vmem:[#allocation17 + $0xd0] sm:$0xff]
        %v1600 = vld [vmem:[#allocation17 + $0xd8] sm:$0xff]
        %v1601 = vld [vmem:[#allocation17 + $0xe0] sm:$0xff]
        %v1602 = vld [vmem:[#allocation17 + $0xe8] sm:$0xff]
        %v1603 = vld [vmem:[#allocation17 + $0xf0] sm:$0xff]
        %v1604 = vld [vmem:[#allocation17 + $0xf8] sm:$0xff]
        %v1605 = vld [vmem:[#allocation17 + $0x100] sm:$0xff]
        %v1606 = vld [vmem:[#allocation17 + $0x108] sm:$0xff]
        %v1607 = vld [vmem:[#allocation17 + $0x110] sm:$0xff]
        %v1608 = vld [vmem:[#allocation17 + $0x118] sm:$0xff]
        %v1609 = vld [vmem:[#allocation17 + $0x120] sm:$0xff]
        %v1610 = vld [vmem:[#allocation17 + $0x128] sm:$0xff]
        %v1611 = vld [vmem:[#allocation17 + $0x130] sm:$0xff]
        %v1612 = vld [vmem:[#allocation17 + $0x138] sm:$0xff]
        %v1613 = vld [vmem:[#allocation17 + $0x140] sm:$0xff]
        %v1614 = vld [vmem:[#allocation17 + $0x148] sm:$0xff]
        %v1615 = vld [vmem:[#allocation17 + $0x150] sm:$0xff]
        %v1616 = vld [vmem:[#allocation17 + $0x158] sm:$0xff]
        %v1617 = vld [vmem:[#allocation17 + $0x160] sm:$0xff]
        %v1618 = vld [vmem:[#allocation17 + $0x168] sm:$0xff]
        %v1619 = vld [vmem:[#allocation17 + $0x170] sm:$0xff]
        %v1620 = vld [vmem:[#allocation17 + $0x178] sm:$0xff]
        %v1621 = vld [vmem:[#allocation17 + $0x180] sm:$0xff]
        %v1622 = vld [vmem:[#allocation17 + $0x188] sm:$0xff]
        %v1623 = vld [vmem:[#allocation17 + $0x190] sm:$0xff]
        %v1624 = vld [vmem:[#allocation17 + $0x198] sm:$0xff]
        %v1625 = vld [vmem:[#allocation17 + $0x1a0] sm:$0xff]
        %v1626 = vld [vmem:[#allocation17 + $0x1a8] sm:$0xff]
        %v1627 = vld [vmem:[#allocation17 + $0x1b0] sm:$0xff]
        %v1628 = vld [vmem:[#allocation17 + $0x1b8] sm:$0xff]
        %v1629 = vld [vmem:[#allocation17 + $0x1c0] sm:$0xff]
        %v1630 = vld [vmem:[#allocation17 + $0x1c8] sm:$0xff]
        %v1631 = vld [vmem:[#allocation17 + $0x1d0] sm:$0xff]
        %v1632 = vld [vmem:[#allocation17 + $0x1d8] sm:$0xff]
        %v1633 = vld [vmem:[#allocation17 + $0x1e0] sm:$0xff]
        %v1634 = vld [vmem:[#allocation17 + $0x1e8] sm:$0xff]
        %v1635 = vld [vmem:[#allocation17 + $0x1f0] sm:$0xff]
        %v1636 = vld [vmem:[#allocation17 + $0x1f8] sm:$0xff]
        %v1637 = vld [vmem:[#allocation19] sm:$0x1]
        %v1639 = vlaneseq
        %v1640 = vshrl.u32 %v1639, 7
        %v1641 = vsub.s32 0, %v1640
        %v1642 = vrot.slane %v1637, %v1641
        %1644 = vmatprep.subr.mxu0 0.0
        %1645 = vmatpush1.msra.mxu0 %v1573
        %1646 = vmatprep.subr.mxu0 0.0
        %1647 = vmatpush1.msra.mxu0 %v1574
        %1648 = vmatprep.subr.mxu0 0.0
        %1649 = vmatpush1.msra.mxu0 %v1575
        %1650 = vmatprep.subr.mxu0 0.0
        %1651 = vmatpush1.msra.mxu0 %v1576
        %1652 = vmatprep.subr.mxu0 0.0
        %1653 = vmatpush1.msra.mxu0 %v1577
        %1654 = vmatprep.subr.mxu0 0.0
        %1655 = vmatpush1.msra.mxu0 %v1578
        %1656 = vmatprep.subr.mxu0 0.0
        %1657 = vmatpush1.msra.mxu0 %v1579
        %1658 = vmatprep.subr.mxu0 0.0
        %1659 = vmatpush1.msra.mxu0 %v1580
        %1660 = vmatprep.subr.mxu0 0.0
        %1661 = vmatpush1.msra.mxu0 %v1581
        %1662 = vmatprep.subr.mxu0 0.0
        %1663 = vmatpush1.msra.mxu0 %v1582
        %1664 = vmatprep.subr.mxu0 0.0
        %1665 = vmatpush1.msra.mxu0 %v1583
        %1666 = vmatprep.subr.mxu0 0.0
        %1667 = vmatpush1.msra.mxu0 %v1584
        %1668 = vmatprep.subr.mxu0 0.0
        %1669 = vmatpush1.msra.mxu0 %v1585
        %1670 = vmatprep.subr.mxu0 0.0
        %1671 = vmatpush1.msra.mxu0 %v1586
        %1672 = vmatprep.subr.mxu0 0.0
        %1673 = vmatpush1.msra.mxu0 %v1587
        %1674 = vmatprep.subr.mxu0 0.0
        %1675 = vmatpush1.msra.mxu0 %v1588
        %1676 = vmatprep.subr.mxu0 0.0
        %1677 = vmatpush1.msra.mxu0 %v1589
        %1678 = vmatprep.subr.mxu0 0.0
        %1679 = vmatpush1.msra.mxu0 %v1590
        %1680 = vmatprep.subr.mxu0 0.0
        %1681 = vmatpush1.msra.mxu0 %v1591
        %1682 = vmatprep.subr.mxu0 0.0
        %1683 = vmatpush1.msra.mxu0 %v1592
        %1684 = vmatprep.subr.mxu0 0.0
        %1685 = vmatpush1.msra.mxu0 %v1593
        %1686 = vmatprep.subr.mxu0 0.0
        %1687 = vmatpush1.msra.mxu0 %v1594
        %1688 = vmatprep.subr.mxu0 0.0
        %1689 = vmatpush1.msra.mxu0 %v1595
        %1690 = vmatprep.subr.mxu0 0.0
        %1691 = vmatpush1.msra.mxu0 %v1596
        %1692 = vmatprep.subr.mxu0 0.0
        %1693 = vmatpush1.msra.mxu0 %v1597
        %1694 = vmatprep.subr.mxu0 0.0
        %1695 = vmatpush1.msra.mxu0 %v1598
        %1696 = vmatprep.subr.mxu0 0.0
        %1697 = vmatpush1.msra.mxu0 %v1599
        %1698 = vmatprep.subr.mxu0 0.0
        %1699 = vmatpush1.msra.mxu0 %v1600
        %1700 = vmatprep.subr.mxu0 0.0
        %1701 = vmatpush1.msra.mxu0 %v1601
        %1702 = vmatprep.subr.mxu0 0.0
        %1703 = vmatpush1.msra.mxu0 %v1602
        %1704 = vmatprep.subr.mxu0 0.0
        %1705 = vmatpush1.msra.mxu0 %v1603
        %1706 = vmatprep.subr.mxu0 0.0
        %1707 = vmatpush1.msra.mxu0 %v1604
        %1708 = vmatprep.mubr.f32.mxu0 %v1566
        %1709 = vmatmul.mubr.f32.gmra.mrb[0].mxu0 %v1565
        %v1710 = vpop.f32.mrb[0].mxu0
        %v1711 = vadd.f32 %v1642, %v1710
        %v1712 = vpop.f32.mrb[0].mxu0
        %1713 = vmatprep.mubr.f32.mxu0 %v1570
        %1714 = vmatmul.mubr.f32.gmra.mrb[0].mxu0 %v1569
        %v1715 = vpop.f32.mrb[0].mxu0
        %v1716 = vadd.f32 %v1642, %v1715
        %v1717 = vpop.f32.mrb[0].mxu0
        %1718 = vdwg.mxu0
        %1719 = vmatprep.subr.mxu0 0.0
        %1720 = vmatpush1.msra.mxu0 %v1605
        %1721 = vmatprep.subr.mxu0 0.0
        %1722 = vmatpush1.msra.mxu0 %v1606
        %1723 = vmatprep.subr.mxu0 0.0
        %1724 = vmatpush1.msra.mxu0 %v1607
        %1725 = vmatprep.subr.mxu0 0.0
        %1726 = vmatpush1.msra.mxu0 %v1608
        %1727 = vmatprep.subr.mxu0 0.0
        %1728 = vmatpush1.msra.mxu0 %v1609
        %1729 = vmatprep.subr.mxu0 0.0
        %1730 = vmatpush1.msra.mxu0 %v1610
        %1731 = vmatprep.subr.mxu0 0.0
        %1732 = vmatpush1.msra.mxu0 %v1611
        %1733 = vmatprep.subr.mxu0 0.0
        %1734 = vmatpush1.msra.mxu0 %v1612
        %1735 = vmatprep.subr.mxu0 0.0
        %1736 = vmatpush1.msra.mxu0 %v1613
        %1737 = vmatprep.subr.mxu0 0.0
        %1738 = vmatpush1.msra.mxu0 %v1614
        %1739 = vmatprep.subr.mxu0 0.0
        %1740 = vmatpush1.msra.mxu0 %v1615
        %1741 = vmatprep.subr.mxu0 0.0
        %1742 = vmatpush1.msra.mxu0 %v1616
        %1743 = vmatprep.subr.mxu0 0.0
        %1744 = vmatpush1.msra.mxu0 %v1617
        %1745 = vmatprep.subr.mxu0 0.0
        %1746 = vmatpush1.msra.mxu0 %v1618
        %1747 = vmatprep.subr.mxu0 0.0
        %1748 = vmatpush1.msra.mxu0 %v1619
        %1749 = vmatprep.subr.mxu0 0.0
        %1750 = vmatpush1.msra.mxu0 %v1620
        %1751 = vmatprep.subr.mxu0 0.0
        %1752 = vmatpush1.msra.mxu0 %v1621
        %1753 = vmatprep.subr.mxu0 0.0
        %1754 = vmatpush1.msra.mxu0 %v1622
        %1755 = vmatprep.subr.mxu0 0.0
        %1756 = vmatpush1.msra.mxu0 %v1623
        %1757 = vmatprep.subr.mxu0 0.0
        %1758 = vmatpush1.msra.mxu0 %v1624
        %1759 = vmatprep.subr.mxu0 0.0
        %1760 = vmatpush1.msra.mxu0 %v1625
        %1761 = vmatprep.subr.mxu0 0.0
        %1762 = vmatpush1.msra.mxu0 %v1626
        %1763 = vmatprep.subr.mxu0 0.0
        %1764 = vmatpush1.msra.mxu0 %v1627
        %1765 = vmatprep.subr.mxu0 0.0
        %1766 = vmatpush1.msra.mxu0 %v1628
        %1767 = vmatprep.subr.mxu0 0.0
        %1768 = vmatpush1.msra.mxu0 %v1629
        %1769 = vmatprep.subr.mxu0 0.0
        %1770 = vmatpush1.msra.mxu0 %v1630
        %1771 = vmatprep.subr.mxu0 0.0
        %1772 = vmatpush1.msra.mxu0 %v1631
        %1773 = vmatprep.subr.mxu0 0.0
        %1774 = vmatpush1.msra.mxu0 %v1632
        %1775 = vmatprep.subr.mxu0 0.0
        %1776 = vmatpush1.msra.mxu0 %v1633
        %1777 = vmatprep.subr.mxu0 0.0
        %1778 = vmatpush1.msra.mxu0 %v1634
        %1779 = vmatprep.subr.mxu0 0.0
        %1780 = vmatpush1.msra.mxu0 %v1635
        %1781 = vmatprep.subr.mxu0 0.0
        %1782 = vmatpush1.msra.mxu0 %v1636
        %1783 = vmatprep.mubr.f32.mxu0 %v1568
        %1784 = vmatmul.mubr.f32.gmra.mrb[0].mxu0 %v1567
        %v1785 = vpop.f32.mrb[0].mxu0
        %v1786 = vadd.f32 %v1711, %v1785
        %v1787 = vpop.f32.mrb[0].mxu0
        %1788 = vmatprep.mubr.f32.mxu0 %v1572
        %1789 = vmatmul.mubr.f32.gmra.mrb[0].mxu0 %v1571
        %v1790 = vpop.f32.mrb[0].mxu0
        %v1791 = vadd.f32 %v1716, %v1790
        %v1792 = vpop.f32.mrb[0].mxu0
        %1793 = vdwg.mxu0
        %1794 = vst [vmem:[%s545] sm:$0xff] %v1786
        %1795 = vst [vmem:[%s545 + $0x8] sm:$0xff] %v1791
        %s1796 = sand.u32 %s277, 1
        %s1797 = scalar_lea.sflag [#allocation4], %s1796
        %s1798 = sand.u32 %s277, 1
        %s1799 = smul.addr %s1798, 16
        %s1800 = scalar_lea.vmem [#allocation20], %s1799
        // Predicated region
        $region109: #{autoencoder_forward.1} parent=63 // pred_check
          %p1801 = pneg %p287
        $region110: #{autoencoder_forward.1} parent=63 // pred_check_branch
          %1803 = sbr.rel (%p1801) target = $region112
        $region111: #{autoencoder_forward.1} parent=63 // pred_region
          %s1804 = smul.u32 2, %s33
          %s1805 = ssub.s32 3, %s1804
          %p1806 = scmp.lt.s32.totalorder %s1805, 2
          %s1807 = scalar_select %p1806, %s1805, 2
          %s1808 = smul.u32 128, %s1807
          %s1810 = ssub.s32 256, %s1808
          %1811 = vsyncadd %s1797, %s1810
          %p1812 = scmp.ne.s32.totalorder 0, %s1808
          %s1813 = smul.addr %s1804, 128
          %s1814 = scalar_lea.hbm %s11, %s1813
          %s1815 = smul.u32 8, %s1807
          %s1816 = sshll.u32 %s1800, 4
          %s1817 = int_to_ptr.vmem [resolvable:$true] %s1816
          %s1818 = sshll.u32 %s1815, 4
          %1822 = dma.vmem_to_hbm [thread:$0]  (%p1812), %s1817, %s1818, %s1814, %s1797, 128, 128, 8
        $region112: #{autoencoder_forward.1} parent=63 // pred_fallthru
          _
      $region64: #{autoencoder_forward.1} parent=5 // pred_fallthru
        _
      %p1823 = scmp.le.s32.totalorder 2, %s28
      // Predicated region
      $region113: #{autoencoder_forward.1} parent=5 // pred_check
        %p1824 = pneg %p1823
      $region114: #{autoencoder_forward.1} parent=5 // pred_check_branch
        %1826 = sbr.rel (%p1824) target = $region116
      $region115: #{autoencoder_forward.1} parent=5 // pred_region
        %s1827 = ssub.s32 %s28, 2
        // Predicated region
        $region117: #{autoencoder_forward.1} parent=115 // pred_check
          %p1828 = pneg %p293
        $region118: #{autoencoder_forward.1} parent=115 // pred_check_branch
          %1830 = sbr.rel (%p1828) target = $region120
        $region119: #{autoencoder_forward.1} parent=115 // pred_region
          %s1831 = sand.u32 %s278, 1
          %s1832 = scalar_lea.sflag [#allocation4], %s1831
          %s1833 = sand.u32 %s278, 1
          %s1834 = smul.addr %s1833, 16
          %s1835 = scalar_lea.vmem [#allocation20], %s1834
          %1836 = dma.done %s1832, 256
        $region120: #{autoencoder_forward.1} parent=115 // pred_fallthru
          _
      $region116: #{autoencoder_forward.1} parent=5 // pred_fallthru
        _
    $region6: #{autoencoder_forward.1} parent=1 // loop_footer
      %s32 = sadd.s32 1, %s28
    $region7: #{autoencoder_forward.1} parent=1 // loop_footer_branch
      %27 = sbr.rel target = $region3
    $region8: #{autoencoder_forward.1} parent=1 // loop_exit
      _
    %1837 = vsyncpa [#allocation3], 1
    %s1838 = scalar_lea.sflag [#allocation3], 1
    %1839 = vsyncpa %s1838, 1
    %1840 = vsyncpa [#allocation6], 1
    %1841 = vsyncpa [#allocation9], 1
    %1842 = vsyncpa [#allocation12], 1
    %1843 = vsyncpa [#allocation15], 1
    %1844 = vsyncpa [#allocation18], 1
    %1845 = vsyncpa [#allocation4], 1
    %s1846 = scalar_lea.sflag [#allocation4], 1
    %1847 = vsyncpa %s1846, 1

</llo_original>
